<compile_context>
chip_gen: v5e
topology: v5e:2x2
jax: 0.10.0
libtpu: 0.0.40
codegen_flags: <defaults>
</compile_context>

<pallas_src>
from functools import partial

import jax
import jax.numpy as jnp
from jax import lax
from jax.experimental import pallas as pl
from jax.experimental.pallas import tpu as pltpu


def lstm_fc_kernel(x_ref, wih_ref, whh_ref, b_ref, fcw_ref, fcb_ref,
                   out_ref, xw_ref):
    """Whole LSTM recurrence + final FC in one kernel invocation (all in VMEM).

    x_ref   : (T*Bp, I)    time-major flattened input, f32
    wih_ref : (I, 4G)      fused input weights,  gate order (i, f, o, g), lane-padded
    whh_ref : (G, 4G)      fused hidden weights, gate order (i, f, o, g), lane-padded
    b_ref   : (1, 4G)      fused bias (b_ih + b_hh), lane-padded
    fcw_ref : (G, Cp)      classifier weight (row- and lane-padded)
    fcb_ref : (1, Cp)      classifier bias   (lane-padded)
    out_ref : (Bp, Cp)
    xw_ref  : (T*Bp, 4G)   VMEM scratch for the hoisted input projection
    """
    TB, I = x_ref.shape
    G, G4 = whh_ref.shape
    Bp = out_ref.shape[0]
    T = TB // Bp

    # Hoisted input projection for ALL timesteps, on the VPU: with I == 3 the
    # MXU would use only 3 contraction rows, so 3 broadcast FMAs are cheaper
    # and keep the MXU free.  Bias is folded in.  Result goes to VMEM scratch
    # so the recurrence reads one (Bp, 4G) slice per step (bounded live range).
    x2d = x_ref[...]                                                  # (T*Bp, I)
    xw = x2d[:, 0:1] * wih_ref[0:1, :] + b_ref[...]                   # (T*Bp, 4G)
    for k in range(1, I):
        xw = xw + x2d[:, k:k + 1] * wih_ref[k:k + 1, :]
    xw_ref[...] = xw

    whh = whh_ref[...]                                                # (G, 4G)

    def step(t, carry):
        h, c = carry
        row = pl.multiple_of(t * Bp, 8)
        # One (Bp, G) @ (G, 4G) MXU matmul on the serial critical path.
        gates = xw_ref[pl.ds(row, Bp), :] + jnp.dot(
            h, whh, preferred_element_type=jnp.float32)               # (Bp, 4G)
        # Gate slots are full 128-lane vregs in order (i, f, o, g):
        # one sigmoid over a contiguous 3G slab + one tanh over the last G.
        sig = jax.nn.sigmoid(gates[:, :3 * G])                        # (Bp, 3G)
        g_g = jnp.tanh(gates[:, 3 * G:])                              # (Bp, G)
        c = sig[:, G:2 * G] * c + sig[:, :G] * g_g                    # f*c + i*g
        h = sig[:, 2 * G:3 * G] * jnp.tanh(c)                         # o*tanh(c)
        return h, c

    h0 = jnp.zeros((Bp, G), jnp.float32)
    c0 = jnp.zeros((Bp, G), jnp.float32)
    h, _ = lax.fori_loop(0, T, step, (h0, c0), unroll=True)

    # Classifier on the last hidden state (== out[:, -1, :] @ W_fc^T + b_fc).
    out = jnp.dot(h, fcw_ref[...], preferred_element_type=jnp.float32) + fcb_ref[...]
    out_ref[...] = out.astype(out_ref.dtype)


@partial(jax.jit, static_argnames=("num_classes",))
def lstm_classifier(x, params, num_classes):
    """Per-call path: activation padding / time-major flatten + pallas_call.

    All weight padding / gate fusion is done once in fuse_params, not here.
    """
    B, T, I = x.shape
    G, G4 = params["whh"].shape
    Cp = params["fcw"].shape[1]
    SUB = 8
    Bp = max(SUB, ((B + SUB - 1) // SUB) * SUB)     # pad batch to sublane multiple

    xp = jnp.pad(x, ((0, Bp - B), (0, 0), (0, 0))) if Bp != B else x
    # Time-major flatten so every timestep is a contiguous, 8-aligned row block.
    x2d = jnp.transpose(xp, (1, 0, 2)).reshape(T * Bp, I)

    flops = 2 * T * Bp * G * G4 + 2 * T * Bp * I * G4 + 2 * Bp * G * Cp
    transcendentals = T * Bp * 5 * G
    bytes_accessed = 4 * (T * Bp * I + I * G4 + G * G4 + G4
                          + G * Cp + Cp + Bp * Cp)
    cost = pl.CostEstimate(flops=flops, transcendentals=transcendentals,
                           bytes_accessed=bytes_accessed)

    vmem = pl.BlockSpec(memory_space=pltpu.MemorySpace.VMEM)
    out = pl.pallas_call(
        lstm_fc_kernel,
        out_shape=jax.ShapeDtypeStruct((Bp, Cp), jnp.float32),
        in_specs=[vmem] * 6,
        out_specs=vmem,
        scratch_shapes=[pltpu.VMEM((T * Bp, G4), jnp.float32)],
        cost_estimate=cost,
    )(x2d, params["wih"], params["whh"], params["b"], params["fcw"], params["fcb"])
    return out[:B, :num_classes]


# ----------------------------------------------------------------------------
# Parameter construction (PyTorch-faithful layout) + one-time fused packing
# ----------------------------------------------------------------------------

def init_raw_params(key, input_size=3, hidden_size=64, num_classes=2):
    """PyTorch-style init: every tensor ~ uniform(-1/sqrt(H), 1/sqrt(H)).

    Layouts mirror torch: weight_ih_l0 (4H, I) stored gate-split (4, H, I),
    weight_hh_l0 (4, H, H), biases (4, H), fc.weight (C, H), fc.bias (C,),
    gate order (i, f, g, o)."""
    H, I, C = hidden_size, input_size, num_classes
    k = 1.0 / float(H) ** 0.5
    keys = jax.random.split(key, 6)
    return dict(
        w_ih=jax.random.uniform(keys[0], (4, H, I), jnp.float32, -k, k),
        w_hh=jax.random.uniform(keys[1], (4, H, H), jnp.float32, -k, k),
        b_ih=jax.random.uniform(keys[2], (4, H), jnp.float32, -k, k),
        b_hh=jax.random.uniform(keys[3], (4, H), jnp.float32, -k, k),
        fc_w=jax.random.uniform(keys[4], (C, H), jnp.float32, -k, k),
        fc_b=jax.random.uniform(keys[5], (C,), jnp.float32, -k, k),
    )


_GATE_PERM = (0, 1, 3, 2)   # PyTorch (i, f, g, o)  ->  fused (i, f, o, g)


def fuse_params(raw):
    """One-time packing: gates concatenated along the last dim in order
    (i, f, o, g), each gate padded to a full 128-lane slot (G lanes), hidden
    rows of whh/fcw padded to G, classifier lane-padded to Cp.  Zero padding
    is exact: padded h/c lanes stay 0 through the recurrence."""
    H = raw["w_hh"].shape[-1]
    C = raw["fc_w"].shape[0]
    LANE = 128
    G = ((H + LANE - 1) // LANE) * LANE            # 64 -> 128 lanes per gate
    Cp = ((C + LANE - 1) // LANE) * LANE

    def pad_cols(w):                               # (rows, H) -> (rows, G)
        return jnp.pad(w, ((0, 0), (0, G - H)))

    wih = jnp.concatenate([pad_cols(raw["w_ih"][p].T) for p in _GATE_PERM],
                          axis=1)                                      # (I, 4G)
    whh = jnp.concatenate([pad_cols(raw["w_hh"][p].T) for p in _GATE_PERM],
                          axis=1)                                      # (H, 4G)
    whh = jnp.pad(whh, ((0, G - H), (0, 0)))                           # (G, 4G)
    b = jnp.concatenate([jnp.pad(raw["b_ih"][p] + raw["b_hh"][p], (0, G - H))
                         for p in _GATE_PERM])[None, :]                # (1, 4G)
    fcw = jnp.pad(raw["fc_w"].T, ((0, G - H), (0, Cp - C)))            # (G, Cp)
    fcb = jnp.pad(raw["fc_b"], (0, Cp - C))[None, :]                   # (1, Cp)
    return dict(wih=wih, whh=whh, b=b, fcw=fcw, fcb=fcb)


def reference(x, raw):
    """Pure-JAX reference with PyTorch LSTM + Linear semantics on raw weights."""
    B, T, _I = x.shape
    H = raw["w_hh"].shape[-1]
    h = jnp.zeros((B, H), jnp.float32)
    c = jnp.zeros((B, H), jnp.float32)
    for t in range(T):
        x_t = x[:, t, :]
        gs = [x_t @ raw["w_ih"][k].T + h @ raw["w_hh"][k].T
              + raw["b_ih"][k] + raw["b_hh"][k] for k in range(4)]
        i = jax.nn.sigmoid(gs[0])
        f = jax.nn.sigmoid(gs[1])
        g = jnp.tanh(gs[2])
        o = jax.nn.sigmoid(gs[3])
        c = f * c + i * g
        h = o * jnp.tanh(c)
    return h @ raw["fc_w"].T + raw["fc_b"][None, :]


if __name__ == "__main__":
    B, T, I, H, C = 2, 8, 3, 64, 2
    key = jax.random.PRNGKey(0)
    kx, kp = jax.random.split(key)
    x = jax.random.normal(kx, (B, T, I), jnp.float32)

    raw = init_raw_params(kp, input_size=I, hidden_size=H, num_classes=C)
    params = fuse_params(raw)            # one-time gate fusion + padding

    out = jax.block_until_ready(lstm_classifier(x, params, num_classes=C))
    ref = reference(x, raw)

    assert out.shape == (B, C), out.shape
    assert jnp.allclose(out, ref, atol=1e-4, rtol=1e-4), (out, ref)
    print("KERNEL_OK")
</pallas_src>

<mosaic_0001>
module attributes {stable_mosaic.version = 11 : i64} {
  func.func @lstm_fc_kernel(%arg0: memref<64x3xf32, #tpu.memory_space<vmem>>, %arg1: memref<3x512xf32, #tpu.memory_space<vmem>>, %arg2: memref<128x512xf32, #tpu.memory_space<vmem>>, %arg3: memref<1x512xf32, #tpu.memory_space<vmem>>, %arg4: memref<128x128xf32, #tpu.memory_space<vmem>>, %arg5: memref<1x128xf32, #tpu.memory_space<vmem>>, %arg6: memref<8x128xf32, #tpu.memory_space<vmem>>, %arg7: memref<64x512xf32, #tpu.memory_space<vmem>>) attributes {dimension_semantics = [], scalar_prefetch = 0 : i64, scratch_operands = 1 : i64, tpu.core_type = #tpu.core_type<tc>} {
    %c0 = arith.constant 0 : index
    %c0_0 = arith.constant 0 : index
    %0 = vector.load %arg0[%c0, %c0_0] : memref<64x3xf32, #tpu.memory_space<vmem>>, vector<64x3xf32>
    %1 = vector.extract_strided_slice %0 {offsets = [0, 0], sizes = [64, 1], strides = [1, 1]} : vector<64x3xf32> to vector<64x1xf32>
    %c0_1 = arith.constant 0 : index
    %c0_2 = arith.constant 0 : index
    %2 = vector.load %arg1[%c0_1, %c0_2] : memref<3x512xf32, #tpu.memory_space<vmem>>, vector<1x512xf32>
    %3 = vector.broadcast %1 : vector<64x1xf32> to vector<64x512xf32>
    %4 = vector.broadcast %2 : vector<1x512xf32> to vector<64x512xf32>
    %5 = arith.mulf %3, %4 : vector<64x512xf32>
    %c0_3 = arith.constant 0 : index
    %c0_4 = arith.constant 0 : index
    %6 = vector.load %arg3[%c0_3, %c0_4] : memref<1x512xf32, #tpu.memory_space<vmem>>, vector<1x512xf32>
    %7 = vector.broadcast %6 : vector<1x512xf32> to vector<64x512xf32>
    %8 = arith.addf %5, %7 : vector<64x512xf32>
    %9 = vector.extract_strided_slice %0 {offsets = [0, 1], sizes = [64, 1], strides = [1, 1]} : vector<64x3xf32> to vector<64x1xf32>
    %c1 = arith.constant 1 : index
    %c0_5 = arith.constant 0 : index
    %10 = vector.load %arg1[%c1, %c0_5] : memref<3x512xf32, #tpu.memory_space<vmem>>, vector<1x512xf32>
    %11 = vector.broadcast %9 : vector<64x1xf32> to vector<64x512xf32>
    %12 = vector.broadcast %10 : vector<1x512xf32> to vector<64x512xf32>
    %13 = arith.mulf %11, %12 : vector<64x512xf32>
    %14 = arith.addf %8, %13 : vector<64x512xf32>
    %15 = vector.extract_strided_slice %0 {offsets = [0, 2], sizes = [64, 1], strides = [1, 1]} : vector<64x3xf32> to vector<64x1xf32>
    %c2 = arith.constant 2 : index
    %c0_6 = arith.constant 0 : index
    %16 = vector.load %arg1[%c2, %c0_6] : memref<3x512xf32, #tpu.memory_space<vmem>>, vector<1x512xf32>
    %17 = vector.broadcast %15 : vector<64x1xf32> to vector<64x512xf32>
    %18 = vector.broadcast %16 : vector<1x512xf32> to vector<64x512xf32>
    %19 = arith.mulf %17, %18 : vector<64x512xf32>
    %20 = arith.addf %14, %19 : vector<64x512xf32>
    %c0_7 = arith.constant 0 : index
    %c0_8 = arith.constant 0 : index
    %21 = vector.load %arg7[%c0_7, %c0_8] : memref<64x512xf32, #tpu.memory_space<vmem>>, vector<64x512xf32>
    tpu.vector_store %arg7[%c0_7, %c0_8], %20 {strides = array<i32>} : memref<64x512xf32, #tpu.memory_space<vmem>>, vector<64x512xf32>,
    %c0_9 = arith.constant 0 : index
    %c0_10 = arith.constant 0 : index
    %22 = vector.load %arg2[%c0_9, %c0_10] : memref<128x512xf32, #tpu.memory_space<vmem>>, vector<128x512xf32>
    %cst = arith.constant 0.000000e+00 : f32
    %23 = vector.broadcast %cst : f32 to vector<8x128xf32>
    %cst_11 = arith.constant 0.000000e+00 : f32
    %24 = vector.broadcast %cst_11 : f32 to vector<8x128xf32>
    %c0_i32 = arith.constant 0 : i32
    %c8_i32 = arith.constant 8 : i32
    %25 = arith.muli %c0_i32, %c8_i32 : i32
    %26 = tpu.assume_multiple %25, 8 : i32
    %27 = arith.index_cast %26 : i32 to index
    %c0_12 = arith.constant 0 : index
    %28 = vector.load %arg7[%27, %c0_12] : memref<64x512xf32, #tpu.memory_space<vmem>>, vector<8x512xf32>
    %cst_13 = arith.constant dense<0.000000e+00> : vector<8x512xf32>
    %29 = tpu.matmul %23, %22, %cst_13 {dimension_numbers = #tpu.dot_dimension_numbers<[1], [0], [0], [1], [0, 0, 1, 1], [], []>} : vector<8x128xf32>, vector<128x512xf32>, vector<8x512xf32> -> vector<8x512xf32>
    %30 = arith.addf %28, %29 : vector<8x512xf32>
    %31 = vector.extract_strided_slice %30 {offsets = [0, 0], sizes = [8, 384], strides = [1, 1]} : vector<8x512xf32> to vector<8x384xf32>
    %32 = arith.negf %31 : vector<8x384xf32>
    %33 = math.exp %32 : vector<8x384xf32>
    %cst_14 = arith.constant 1.000000e+00 : f32
    %34 = vector.broadcast %cst_14 : f32 to vector<8x384xf32>
    %35 = arith.addf %34, %33 : vector<8x384xf32>
    %36 = arith.divf %34, %35 : vector<8x384xf32>
    %37 = vector.extract_strided_slice %30 {offsets = [0, 384], sizes = [8, 128], strides = [1, 1]} : vector<8x512xf32> to vector<8x128xf32>
    %38 = math.tanh %37 : vector<8x128xf32>
    %39 = vector.extract_strided_slice %36 {offsets = [0, 128], sizes = [8, 128], strides = [1, 1]} : vector<8x384xf32> to vector<8x128xf32>
    %40 = arith.mulf %39, %24 : vector<8x128xf32>
    %41 = vector.extract_strided_slice %36 {offsets = [0, 0], sizes = [8, 128], strides = [1, 1]} : vector<8x384xf32> to vector<8x128xf32>
    %42 = arith.mulf %41, %38 : vector<8x128xf32>
    %43 = arith.addf %40, %42 : vector<8x128xf32>
    %44 = vector.extract_strided_slice %36 {offsets = [0, 256], sizes = [8, 128], strides = [1, 1]} : vector<8x384xf32> to vector<8x128xf32>
    %45 = math.tanh %43 : vector<8x128xf32>
    %46 = arith.mulf %44, %45 : vector<8x128xf32>
    %c1_i32 = arith.constant 1 : i32
    %c8_i32_15 = arith.constant 8 : i32
    %47 = arith.muli %c1_i32, %c8_i32_15 : i32
    %48 = tpu.assume_multiple %47, 8 : i32
    %49 = arith.index_cast %48 : i32 to index
    %c0_16 = arith.constant 0 : index
    %50 = vector.load %arg7[%49, %c0_16] : memref<64x512xf32, #tpu.memory_space<vmem>>, vector<8x512xf32>
    %cst_17 = arith.constant dense<0.000000e+00> : vector<8x512xf32>
    %51 = tpu.matmul %46, %22, %cst_17 {dimension_numbers = #tpu.dot_dimension_numbers<[1], [0], [0], [1], [0, 0, 1, 1], [], []>} : vector<8x128xf32>, vector<128x512xf32>, vector<8x512xf32> -> vector<8x512xf32>
    %52 = arith.addf %50, %51 : vector<8x512xf32>
    %53 = vector.extract_strided_slice %52 {offsets = [0, 0], sizes = [8, 384], strides = [1, 1]} : vector<8x512xf32> to vector<8x384xf32>
    %54 = arith.negf %53 : vector<8x384xf32>
    %55 = math.exp %54 : vector<8x384xf32>
    %cst_18 = arith.constant 1.000000e+00 : f32
    %56 = vector.broadcast %cst_18 : f32 to vector<8x384xf32>
    %57 = arith.addf %56, %55 : vector<8x384xf32>
    %58 = arith.divf %56, %57 : vector<8x384xf32>
    %59 = vector.extract_strided_slice %52 {offsets = [0, 384], sizes = [8, 128], strides = [1, 1]} : vector<8x512xf32> to vector<8x128xf32>
    %60 = math.tanh %59 : vector<8x128xf32>
    %61 = vector.extract_strided_slice %58 {offsets = [0, 128], sizes = [8, 128], strides = [1, 1]} : vector<8x384xf32> to vector<8x128xf32>
    %62 = arith.mulf %61, %43 : vector<8x128xf32>
    %63 = vector.extract_strided_slice %58 {offsets = [0, 0], sizes = [8, 128], strides = [1, 1]} : vector<8x384xf32> to vector<8x128xf32>
    %64 = arith.mulf %63, %60 : vector<8x128xf32>
    %65 = arith.addf %62, %64 : vector<8x128xf32>
    %66 = vector.extract_strided_slice %58 {offsets = [0, 256], sizes = [8, 128], strides = [1, 1]} : vector<8x384xf32> to vector<8x128xf32>
    %67 = math.tanh %65 : vector<8x128xf32>
    %68 = arith.mulf %66, %67 : vector<8x128xf32>
    %c2_i32 = arith.constant 2 : i32
    %c8_i32_19 = arith.constant 8 : i32
    %69 = arith.muli %c2_i32, %c8_i32_19 : i32
    %70 = tpu.assume_multiple %69, 8 : i32
    %71 = arith.index_cast %70 : i32 to index
    %c0_20 = arith.constant 0 : index
    %72 = vector.load %arg7[%71, %c0_20] : memref<64x512xf32, #tpu.memory_space<vmem>>, vector<8x512xf32>
    %cst_21 = arith.constant dense<0.000000e+00> : vector<8x512xf32>
    %73 = tpu.matmul %68, %22, %cst_21 {dimension_numbers = #tpu.dot_dimension_numbers<[1], [0], [0], [1], [0, 0, 1, 1], [], []>} : vector<8x128xf32>, vector<128x512xf32>, vector<8x512xf32> -> vector<8x512xf32>
    %74 = arith.addf %72, %73 : vector<8x512xf32>
    %75 = vector.extract_strided_slice %74 {offsets = [0, 0], sizes = [8, 384], strides = [1, 1]} : vector<8x512xf32> to vector<8x384xf32>
    %76 = arith.negf %75 : vector<8x384xf32>
    %77 = math.exp %76 : vector<8x384xf32>
    %cst_22 = arith.constant 1.000000e+00 : f32
    %78 = vector.broadcast %cst_22 : f32 to vector<8x384xf32>
    %79 = arith.addf %78, %77 : vector<8x384xf32>
    %80 = arith.divf %78, %79 : vector<8x384xf32>
    %81 = vector.extract_strided_slice %74 {offsets = [0, 384], sizes = [8, 128], strides = [1, 1]} : vector<8x512xf32> to vector<8x128xf32>
    %82 = math.tanh %81 : vector<8x128xf32>
    %83 = vector.extract_strided_slice %80 {offsets = [0, 128], sizes = [8, 128], strides = [1, 1]} : vector<8x384xf32> to vector<8x128xf32>
    %84 = arith.mulf %83, %65 : vector<8x128xf32>
    %85 = vector.extract_strided_slice %80 {offsets = [0, 0], sizes = [8, 128], strides = [1, 1]} : vector<8x384xf32> to vector<8x128xf32>
    %86 = arith.mulf %85, %82 : vector<8x128xf32>
    %87 = arith.addf %84, %86 : vector<8x128xf32>
    %88 = vector.extract_strided_slice %80 {offsets = [0, 256], sizes = [8, 128], strides = [1, 1]} : vector<8x384xf32> to vector<8x128xf32>
    %89 = math.tanh %87 : vector<8x128xf32>
    %90 = arith.mulf %88, %89 : vector<8x128xf32>
    %c3_i32 = arith.constant 3 : i32
    %c8_i32_23 = arith.constant 8 : i32
    %91 = arith.muli %c3_i32, %c8_i32_23 : i32
    %92 = tpu.assume_multiple %91, 8 : i32
    %93 = arith.index_cast %92 : i32 to index
    %c0_24 = arith.constant 0 : index
    %94 = vector.load %arg7[%93, %c0_24] : memref<64x512xf32, #tpu.memory_space<vmem>>, vector<8x512xf32>
    %cst_25 = arith.constant dense<0.000000e+00> : vector<8x512xf32>
    %95 = tpu.matmul %90, %22, %cst_25 {dimension_numbers = #tpu.dot_dimension_numbers<[1], [0], [0], [1], [0, 0, 1, 1], [], []>} : vector<8x128xf32>, vector<128x512xf32>, vector<8x512xf32> -> vector<8x512xf32>
    %96 = arith.addf %94, %95 : vector<8x512xf32>
    %97 = vector.extract_strided_slice %96 {offsets = [0, 0], sizes = [8, 384], strides = [1, 1]} : vector<8x512xf32> to vector<8x384xf32>
    %98 = arith.negf %97 : vector<8x384xf32>
    %99 = math.exp %98 : vector<8x384xf32>
    %cst_26 = arith.constant 1.000000e+00 : f32
    %100 = vector.broadcast %cst_26 : f32 to vector<8x384xf32>
    %101 = arith.addf %100, %99 : vector<8x384xf32>
    %102 = arith.divf %100, %101 : vector<8x384xf32>
    %103 = vector.extract_strided_slice %96 {offsets = [0, 384], sizes = [8, 128], strides = [1, 1]} : vector<8x512xf32> to vector<8x128xf32>
    %104 = math.tanh %103 : vector<8x128xf32>
    %105 = vector.extract_strided_slice %102 {offsets = [0, 128], sizes = [8, 128], strides = [1, 1]} : vector<8x384xf32> to vector<8x128xf32>
    %106 = arith.mulf %105, %87 : vector<8x128xf32>
    %107 = vector.extract_strided_slice %102 {offsets = [0, 0], sizes = [8, 128], strides = [1, 1]} : vector<8x384xf32> to vector<8x128xf32>
    %108 = arith.mulf %107, %104 : vector<8x128xf32>
    %109 = arith.addf %106, %108 : vector<8x128xf32>
    %110 = vector.extract_strided_slice %102 {offsets = [0, 256], sizes = [8, 128], strides = [1, 1]} : vector<8x384xf32> to vector<8x128xf32>
    %111 = math.tanh %109 : vector<8x128xf32>
    %112 = arith.mulf %110, %111 : vector<8x128xf32>
    %c4_i32 = arith.constant 4 : i32
    %c8_i32_27 = arith.constant 8 : i32
    %113 = arith.muli %c4_i32, %c8_i32_27 : i32
    %114 = tpu.assume_multiple %113, 8 : i32
    %115 = arith.index_cast %114 : i32 to index
    %c0_28 = arith.constant 0 : index
    %116 = vector.load %arg7[%115, %c0_28] : memref<64x512xf32, #tpu.memory_space<vmem>>, vector<8x512xf32>
    %cst_29 = arith.constant dense<0.000000e+00> : vector<8x512xf32>
    %117 = tpu.matmul %112, %22, %cst_29 {dimension_numbers = #tpu.dot_dimension_numbers<[1], [0], [0], [1], [0, 0, 1, 1], [], []>} : vector<8x128xf32>, vector<128x512xf32>, vector<8x512xf32> -> vector<8x512xf32>
    %118 = arith.addf %116, %117 : vector<8x512xf32>
    %119 = vector.extract_strided_slice %118 {offsets = [0, 0], sizes = [8, 384], strides = [1, 1]} : vector<8x512xf32> to vector<8x384xf32>
    %120 = arith.negf %119 : vector<8x384xf32>
    %121 = math.exp %120 : vector<8x384xf32>
    %cst_30 = arith.constant 1.000000e+00 : f32
    %122 = vector.broadcast %cst_30 : f32 to vector<8x384xf32>
    %123 = arith.addf %122, %121 : vector<8x384xf32>
    %124 = arith.divf %122, %123 : vector<8x384xf32>
    %125 = vector.extract_strided_slice %118 {offsets = [0, 384], sizes = [8, 128], strides = [1, 1]} : vector<8x512xf32> to vector<8x128xf32>
    %126 = math.tanh %125 : vector<8x128xf32>
    %127 = vector.extract_strided_slice %124 {offsets = [0, 128], sizes = [8, 128], strides = [1, 1]} : vector<8x384xf32> to vector<8x128xf32>
    %128 = arith.mulf %127, %109 : vector<8x128xf32>
    %129 = vector.extract_strided_slice %124 {offsets = [0, 0], sizes = [8, 128], strides = [1, 1]} : vector<8x384xf32> to vector<8x128xf32>
    %130 = arith.mulf %129, %126 : vector<8x128xf32>
    %131 = arith.addf %128, %130 : vector<8x128xf32>
    %132 = vector.extract_strided_slice %124 {offsets = [0, 256], sizes = [8, 128], strides = [1, 1]} : vector<8x384xf32> to vector<8x128xf32>
    %133 = math.tanh %131 : vector<8x128xf32>
    %134 = arith.mulf %132, %133 : vector<8x128xf32>
    %c5_i32 = arith.constant 5 : i32
    %c8_i32_31 = arith.constant 8 : i32
    %135 = arith.muli %c5_i32, %c8_i32_31 : i32
    %136 = tpu.assume_multiple %135, 8 : i32
    %137 = arith.index_cast %136 : i32 to index
    %c0_32 = arith.constant 0 : index
    %138 = vector.load %arg7[%137, %c0_32] : memref<64x512xf32, #tpu.memory_space<vmem>>, vector<8x512xf32>
    %cst_33 = arith.constant dense<0.000000e+00> : vector<8x512xf32>
    %139 = tpu.matmul %134, %22, %cst_33 {dimension_numbers = #tpu.dot_dimension_numbers<[1], [0], [0], [1], [0, 0, 1, 1], [], []>} : vector<8x128xf32>, vector<128x512xf32>, vector<8x512xf32> -> vector<8x512xf32>
    %140 = arith.addf %138, %139 : vector<8x512xf32>
    %141 = vector.extract_strided_slice %140 {offsets = [0, 0], sizes = [8, 384], strides = [1, 1]} : vector<8x512xf32> to vector<8x384xf32>
    %142 = arith.negf %141 : vector<8x384xf32>
    %143 = math.exp %142 : vector<8x384xf32>
    %cst_34 = arith.constant 1.000000e+00 : f32
    %144 = vector.broadcast %cst_34 : f32 to vector<8x384xf32>
    %145 = arith.addf %144, %143 : vector<8x384xf32>
    %146 = arith.divf %144, %145 : vector<8x384xf32>
    %147 = vector.extract_strided_slice %140 {offsets = [0, 384], sizes = [8, 128], strides = [1, 1]} : vector<8x512xf32> to vector<8x128xf32>
    %148 = math.tanh %147 : vector<8x128xf32>
    %149 = vector.extract_strided_slice %146 {offsets = [0, 128], sizes = [8, 128], strides = [1, 1]} : vector<8x384xf32> to vector<8x128xf32>
    %150 = arith.mulf %149, %131 : vector<8x128xf32>
    %151 = vector.extract_strided_slice %146 {offsets = [0, 0], sizes = [8, 128], strides = [1, 1]} : vector<8x384xf32> to vector<8x128xf32>
    %152 = arith.mulf %151, %148 : vector<8x128xf32>
    %153 = arith.addf %150, %152 : vector<8x128xf32>
    %154 = vector.extract_strided_slice %146 {offsets = [0, 256], sizes = [8, 128], strides = [1, 1]} : vector<8x384xf32> to vector<8x128xf32>
    %155 = math.tanh %153 : vector<8x128xf32>
    %156 = arith.mulf %154, %155 : vector<8x128xf32>
    %c6_i32 = arith.constant 6 : i32
    %c8_i32_35 = arith.constant 8 : i32
    %157 = arith.muli %c6_i32, %c8_i32_35 : i32
    %158 = tpu.assume_multiple %157, 8 : i32
    %159 = arith.index_cast %158 : i32 to index
    %c0_36 = arith.constant 0 : index
    %160 = vector.load %arg7[%159, %c0_36] : memref<64x512xf32, #tpu.memory_space<vmem>>, vector<8x512xf32>
    %cst_37 = arith.constant dense<0.000000e+00> : vector<8x512xf32>
    %161 = tpu.matmul %156, %22, %cst_37 {dimension_numbers = #tpu.dot_dimension_numbers<[1], [0], [0], [1], [0, 0, 1, 1], [], []>} : vector<8x128xf32>, vector<128x512xf32>, vector<8x512xf32> -> vector<8x512xf32>
    %162 = arith.addf %160, %161 : vector<8x512xf32>
    %163 = vector.extract_strided_slice %162 {offsets = [0, 0], sizes = [8, 384], strides = [1, 1]} : vector<8x512xf32> to vector<8x384xf32>
    %164 = arith.negf %163 : vector<8x384xf32>
    %165 = math.exp %164 : vector<8x384xf32>
    %cst_38 = arith.constant 1.000000e+00 : f32
    %166 = vector.broadcast %cst_38 : f32 to vector<8x384xf32>
    %167 = arith.addf %166, %165 : vector<8x384xf32>
    %168 = arith.divf %166, %167 : vector<8x384xf32>
    %169 = vector.extract_strided_slice %162 {offsets = [0, 384], sizes = [8, 128], strides = [1, 1]} : vector<8x512xf32> to vector<8x128xf32>
    %170 = math.tanh %169 : vector<8x128xf32>
    %171 = vector.extract_strided_slice %168 {offsets = [0, 128], sizes = [8, 128], strides = [1, 1]} : vector<8x384xf32> to vector<8x128xf32>
    %172 = arith.mulf %171, %153 : vector<8x128xf32>
    %173 = vector.extract_strided_slice %168 {offsets = [0, 0], sizes = [8, 128], strides = [1, 1]} : vector<8x384xf32> to vector<8x128xf32>
    %174 = arith.mulf %173, %170 : vector<8x128xf32>
    %175 = arith.addf %172, %174 : vector<8x128xf32>
    %176 = vector.extract_strided_slice %168 {offsets = [0, 256], sizes = [8, 128], strides = [1, 1]} : vector<8x384xf32> to vector<8x128xf32>
    %177 = math.tanh %175 : vector<8x128xf32>
    %178 = arith.mulf %176, %177 : vector<8x128xf32>
    %c7_i32 = arith.constant 7 : i32
    %c8_i32_39 = arith.constant 8 : i32
    %179 = arith.muli %c7_i32, %c8_i32_39 : i32
    %180 = tpu.assume_multiple %179, 8 : i32
    %181 = arith.index_cast %180 : i32 to index
    %c0_40 = arith.constant 0 : index
    %182 = vector.load %arg7[%181, %c0_40] : memref<64x512xf32, #tpu.memory_space<vmem>>, vector<8x512xf32>
    %cst_41 = arith.constant dense<0.000000e+00> : vector<8x512xf32>
    %183 = tpu.matmul %178, %22, %cst_41 {dimension_numbers = #tpu.dot_dimension_numbers<[1], [0], [0], [1], [0, 0, 1, 1], [], []>} : vector<8x128xf32>, vector<128x512xf32>, vector<8x512xf32> -> vector<8x512xf32>
    %184 = arith.addf %182, %183 : vector<8x512xf32>
    %185 = vector.extract_strided_slice %184 {offsets = [0, 0], sizes = [8, 384], strides = [1, 1]} : vector<8x512xf32> to vector<8x384xf32>
    %186 = arith.negf %185 : vector<8x384xf32>
    %187 = math.exp %186 : vector<8x384xf32>
    %cst_42 = arith.constant 1.000000e+00 : f32
    %188 = vector.broadcast %cst_42 : f32 to vector<8x384xf32>
    %189 = arith.addf %188, %187 : vector<8x384xf32>
    %190 = arith.divf %188, %189 : vector<8x384xf32>
    %191 = vector.extract_strided_slice %184 {offsets = [0, 384], sizes = [8, 128], strides = [1, 1]} : vector<8x512xf32> to vector<8x128xf32>
    %192 = math.tanh %191 : vector<8x128xf32>
    %193 = vector.extract_strided_slice %190 {offsets = [0, 128], sizes = [8, 128], strides = [1, 1]} : vector<8x384xf32> to vector<8x128xf32>
    %194 = arith.mulf %193, %175 : vector<8x128xf32>
    %195 = vector.extract_strided_slice %190 {offsets = [0, 0], sizes = [8, 128], strides = [1, 1]} : vector<8x384xf32> to vector<8x128xf32>
    %196 = arith.mulf %195, %192 : vector<8x128xf32>
    %197 = arith.addf %194, %196 : vector<8x128xf32>
    %198 = vector.extract_strided_slice %190 {offsets = [0, 256], sizes = [8, 128], strides = [1, 1]} : vector<8x384xf32> to vector<8x128xf32>
    %199 = math.tanh %197 : vector<8x128xf32>
    %200 = arith.mulf %198, %199 : vector<8x128xf32>
    %c8_i32_43 = arith.constant 8 : i32
    %c0_44 = arith.constant 0 : index
    %c0_45 = arith.constant 0 : index
    %201 = vector.load %arg4[%c0_44, %c0_45] : memref<128x128xf32, #tpu.memory_space<vmem>>, vector<128x128xf32>
    %cst_46 = arith.constant dense<0.000000e+00> : vector<8x128xf32>
    %202 = tpu.matmul %200, %201, %cst_46 {dimension_numbers = #tpu.dot_dimension_numbers<[1], [0], [0], [1], [0, 0, 1, 1], [], []>} : vector<8x128xf32>, vector<128x128xf32>, vector<8x128xf32> -> vector<8x128xf32>
    %c0_47 = arith.constant 0 : index
    %c0_48 = arith.constant 0 : index
    %203 = vector.load %arg5[%c0_47, %c0_48] : memref<1x128xf32, #tpu.memory_space<vmem>>, vector<1x128xf32>
    %204 = vector.broadcast %203 : vector<1x128xf32> to vector<8x128xf32>
    %205 = arith.addf %202, %204 : vector<8x128xf32>
    %c0_49 = arith.constant 0 : index
    %c0_50 = arith.constant 0 : index
    %206 = vector.load %arg6[%c0_49, %c0_50] : memref<8x128xf32, #tpu.memory_space<vmem>>, vector<8x128xf32>
    tpu.vector_store %arg6[%c0_49, %c0_50], %205 {strides = array<i32>} : memref<8x128xf32, #tpu.memory_space<vmem>>, vector<8x128xf32>,
    return
  }
}

</mosaic_0001>

<llo_original>
// kernel: lstm_classifier.1
$region0: #{lstm_classifier.1}
  #allocation0 [shape = 'u32[]', space=smem, size = 0x4, offset = 0x4, fixed_abs, tag = 'smem constant byte address 0x4 - core index']
  #allocation1 [shape = 'u32[72,128]{1,0:T(1,128)}', space=vmem, size = 0x9000, scoped, tag = 'internal scratch']
  #allocation2 [shape = 'f32[64,512]{1,0:T(8,128)}', space=vmem, size = 0x20000, scoped, tag = 'scratch operand']
  %s0 = inlined_call_operand.vmem [shape: f32[64,3], index: 0, kind: input, shape index: {}]
  %s1 = inlined_call_operand.vmem [shape: f32[3,512], index: 1, kind: input, shape index: {}]
  %s2 = inlined_call_operand.hbm [shape: f32[128,512], index: 2, kind: input, shape index: {}]
  %s3 = inlined_call_operand.vmem [shape: f32[1,512], index: 3, kind: input, shape index: {}]
  %s4 = inlined_call_operand.hbm [shape: f32[128,128], index: 4, kind: input, shape index: {}]
  %s5 = inlined_call_operand.vmem [shape: f32[1,128], index: 5, kind: input, shape index: {}]
  %s6 = inlined_call_operand.vmem [shape: f32[8,128], index: 6, kind: output, shape index: {}]
  %s7 = sld [smem:[#allocation0]]
  $region42: #{lstm_classifier.1} parent=0
    _
  %s9 = ssub.s32 1, %s7
  %s10 = scalar_select 0, %s9, %s7
  $region1: #{lstm_classifier.1} parent=0
    #allocation3 [shape = 'u8[262144]{0}', space=vmem, size = 0x40000, scoped, tag = 'input window, operand 2, single buffered']
    #allocation4 [shape = 's32[1]{0}', space=sflag, size = 0x4, scoped, tag = 'scoped memory for lstm_classifier.1']
    #allocation5 [shape = 'u8[65536]{0}', space=vmem, size = 0x10000, scoped, tag = 'input window, operand 4, single buffered']
    #allocation6 [shape = 's32[1]{0}', space=sflag, size = 0x4, scoped, tag = 'scoped memory for lstm_classifier.1']
    %11 = vsyncpa [#allocation4], 0
    %12 = vsyncpa [#allocation6], 0
    // Predicated region
    $region2: #{lstm_classifier.1} parent=1 // pred_check
      _
    $region3: #{lstm_classifier.1} parent=1 // pred_check_branch
      %14 = sbr.rel (0) target = $region5
    $region4: #{lstm_classifier.1} parent=1 // pred_region
      _
    $region5: #{lstm_classifier.1} parent=1 // pred_fallthru
      _
    // Predicated region
    $region6: #{lstm_classifier.1} parent=1 // pred_check
      _
    $region7: #{lstm_classifier.1} parent=1 // pred_check_branch
      %16 = sbr.rel (0) target = $region9
    $region8: #{lstm_classifier.1} parent=1 // pred_region
      _
    $region9: #{lstm_classifier.1} parent=1 // pred_fallthru
      _
    // Predicated region
    $region10: #{lstm_classifier.1} parent=1 // pred_check
      _
    $region11: #{lstm_classifier.1} parent=1 // pred_check_branch
      %18 = sbr.rel (0) target = $region13
    $region12: #{lstm_classifier.1} parent=1 // pred_region
      %20 = vsyncadd [#allocation4], 0
      %s21 = sshll.u32 %s2, 4
      %s22 = int_to_ptr.hbm [resolvable:$true] %s21
      %s23 = sshll.u32 [#allocation3], 4
      %s24 = int_to_ptr.vmem [resolvable:$true] %s23
      %29 = dma.hbm_to_vmem [thread:$0]  %s22, 8192, %s24, [#allocation4], 512, 512, 32
    $region13: #{lstm_classifier.1} parent=1 // pred_fallthru
      _
    // Predicated region
    $region14: #{lstm_classifier.1} parent=1 // pred_check
      _
    $region15: #{lstm_classifier.1} parent=1 // pred_check_branch
      %31 = sbr.rel (0) target = $region17
    $region16: #{lstm_classifier.1} parent=1 // pred_region
      _
    $region17: #{lstm_classifier.1} parent=1 // pred_fallthru
      _
    // Predicated region
    $region18: #{lstm_classifier.1} parent=1 // pred_check
      _
    $region19: #{lstm_classifier.1} parent=1 // pred_check_branch
      %33 = sbr.rel (0) target = $region21
    $region20: #{lstm_classifier.1} parent=1 // pred_region
      %35 = vsyncadd [#allocation6], 0
      %s36 = sshll.u32 %s4, 4
      %s37 = int_to_ptr.hbm [resolvable:$true] %s36
      %s38 = sshll.u32 [#allocation5], 4
      %s39 = int_to_ptr.vmem [resolvable:$true] %s38
      %44 = dma.hbm_to_vmem [thread:$0]  %s37, 2048, %s39, [#allocation6], 128, 128, 8
    $region21: #{lstm_classifier.1} parent=1 // pred_fallthru
      _
    // Predicated region
    $region22: #{lstm_classifier.1} parent=1 // pred_check
      _
    $region23: #{lstm_classifier.1} parent=1 // pred_check_branch
      %46 = sbr.rel (0) target = $region25
    $region24: #{lstm_classifier.1} parent=1 // pred_region
      _
    $region25: #{lstm_classifier.1} parent=1 // pred_fallthru
      _
    // Predicated region
    $region26: #{lstm_classifier.1} parent=1 // pred_check
      _
    $region27: #{lstm_classifier.1} parent=1 // pred_check_branch
      %48 = sbr.rel (0) target = $region29
    $region28: #{lstm_classifier.1} parent=1 // pred_region
      %50 = dma.done [#allocation4], 8192
    $region29: #{lstm_classifier.1} parent=1 // pred_fallthru
      _
    // Predicated region
    $region30: #{lstm_classifier.1} parent=1 // pred_check
      _
    $region31: #{lstm_classifier.1} parent=1 // pred_check_branch
      %52 = sbr.rel (0) target = $region33
    $region32: #{lstm_classifier.1} parent=1 // pred_region
      %54 = dma.done [#allocation6], 2048
    $region33: #{lstm_classifier.1} parent=1 // pred_fallthru
      _
    %v55 = vld [vmem:[%s0] sm:$0xff]
    %v56 = vld [vmem:[%s0 + $0x8] sm:$0xff]
    %v57 = vld [vmem:[%s0 + $0x10] sm:$0xff]
    %v58 = vld [vmem:[%s0 + $0x18] sm:$0xff]
    %v59 = vld [vmem:[%s0 + $0x20] sm:$0xff]
    %v60 = vld [vmem:[%s0 + $0x28] sm:$0xff]
    %v61 = vld [vmem:[%s0 + $0x30] sm:$0xff]
    %v62 = vld [vmem:[%s0 + $0x38] sm:$0xff]
    %v63 = vld [vmem:[%s1] ss:$4 sm:$0xf]
    %65 = vset.pattern.permute.xlu0 0
    %66 = vperm.xlu0 %65, %v55
    %v67 = vpop.permute.xlu0 %66
    %70 = vset.pattern.permute.xlu0 0
    %71 = vperm.xlu0 %70, %v56
    %v72 = vpop.permute.xlu0 %71
    %75 = vset.pattern.permute.xlu0 0
    %76 = vperm.xlu0 %75, %v57
    %v77 = vpop.permute.xlu0 %76
    %80 = vset.pattern.permute.xlu0 0
    %81 = vperm.xlu0 %80, %v58
    %v82 = vpop.permute.xlu0 %81
    %85 = vset.pattern.permute.xlu0 0
    %86 = vperm.xlu0 %85, %v59
    %v87 = vpop.permute.xlu0 %86
    %90 = vset.pattern.permute.xlu0 0
    %91 = vperm.xlu0 %90, %v60
    %v92 = vpop.permute.xlu0 %91
    %95 = vset.pattern.permute.xlu0 0
    %96 = vperm.xlu0 %95, %v61
    %v97 = vpop.permute.xlu0 %96
    %100 = vset.pattern.permute.xlu0 0
    %101 = vperm.xlu0 %100, %v62
    %v102 = vpop.permute.xlu0 %101
    %v105 = vperm.slane %v63, 0
    %v106 = vperm.slane %v63, 1
    %v107 = vperm.slane %v63, 2
    %v108 = vperm.slane %v63, 3
    %v113 = vmul.f32 %v67, %v105
    %v114 = vmul.f32 %v67, %v106
    %v115 = vmul.f32 %v67, %v107
    %v116 = vmul.f32 %v67, %v108
    %v117 = vmul.f32 %v72, %v105
    %v118 = vmul.f32 %v72, %v106
    %v119 = vmul.f32 %v72, %v107
    %v120 = vmul.f32 %v72, %v108
    %v121 = vmul.f32 %v77, %v105
    %v122 = vmul.f32 %v77, %v106
    %v123 = vmul.f32 %v77, %v107
    %v124 = vmul.f32 %v77, %v108
    %v125 = vmul.f32 %v82, %v105
    %v126 = vmul.f32 %v82, %v106
    %v127 = vmul.f32 %v82, %v107
    %v128 = vmul.f32 %v82, %v108
    %v129 = vmul.f32 %v87, %v105
    %v130 = vmul.f32 %v87, %v106
    %v131 = vmul.f32 %v87, %v107
    %v132 = vmul.f32 %v87, %v108
    %v133 = vmul.f32 %v92, %v105
    %v134 = vmul.f32 %v92, %v106
    %v135 = vmul.f32 %v92, %v107
    %v136 = vmul.f32 %v92, %v108
    %v137 = vmul.f32 %v97, %v105
    %v138 = vmul.f32 %v97, %v106
    %v139 = vmul.f32 %v97, %v107
    %v140 = vmul.f32 %v97, %v108
    %v141 = vmul.f32 %v102, %v105
    %v142 = vmul.f32 %v102, %v106
    %v143 = vmul.f32 %v102, %v107
    %v144 = vmul.f32 %v102, %v108
    %v145 = vld [vmem:[%s3] sm:$0xf]
    %v147 = vperm.slane %v145, 0
    %v148 = vperm.slane %v145, 1
    %v149 = vperm.slane %v145, 2
    %v150 = vperm.slane %v145, 3
    %v155 = vadd.f32 %v113, %v147
    %v156 = vadd.f32 %v114, %v148
    %v157 = vadd.f32 %v115, %v149
    %v158 = vadd.f32 %v116, %v150
    %v159 = vadd.f32 %v117, %v147
    %v160 = vadd.f32 %v118, %v148
    %v161 = vadd.f32 %v119, %v149
    %v162 = vadd.f32 %v120, %v150
    %v163 = vadd.f32 %v121, %v147
    %v164 = vadd.f32 %v122, %v148
    %v165 = vadd.f32 %v123, %v149
    %v166 = vadd.f32 %v124, %v150
    %v167 = vadd.f32 %v125, %v147
    %v168 = vadd.f32 %v126, %v148
    %v169 = vadd.f32 %v127, %v149
    %v170 = vadd.f32 %v128, %v150
    %v171 = vadd.f32 %v129, %v147
    %v172 = vadd.f32 %v130, %v148
    %v173 = vadd.f32 %v131, %v149
    %v174 = vadd.f32 %v132, %v150
    %v175 = vadd.f32 %v133, %v147
    %v176 = vadd.f32 %v134, %v148
    %v177 = vadd.f32 %v135, %v149
    %v178 = vadd.f32 %v136, %v150
    %v179 = vadd.f32 %v137, %v147
    %v180 = vadd.f32 %v138, %v148
    %v181 = vadd.f32 %v139, %v149
    %v182 = vadd.f32 %v140, %v150
    %v183 = vadd.f32 %v141, %v147
    %v184 = vadd.f32 %v142, %v148
    %v185 = vadd.f32 %v143, %v149
    %v186 = vadd.f32 %v144, %v150
    %s187 = scalar_lea.vmem %s1, 1
    %v188 = vld [vmem:[%s187] ss:$4 sm:$0xf]
    %189 = vset.pattern.permute.xlu0 1
    %190 = vperm.xlu0 %189, %v55
    %v191 = vpop.permute.xlu0 %190
    %193 = vset.pattern.permute.xlu0 1
    %194 = vperm.xlu0 %193, %v56
    %v195 = vpop.permute.xlu0 %194
    %197 = vset.pattern.permute.xlu0 1
    %198 = vperm.xlu0 %197, %v57
    %v199 = vpop.permute.xlu0 %198
    %201 = vset.pattern.permute.xlu0 1
    %202 = vperm.xlu0 %201, %v58
    %v203 = vpop.permute.xlu0 %202
    %205 = vset.pattern.permute.xlu0 1
    %206 = vperm.xlu0 %205, %v59
    %v207 = vpop.permute.xlu0 %206
    %209 = vset.pattern.permute.xlu0 1
    %210 = vperm.xlu0 %209, %v60
    %v211 = vpop.permute.xlu0 %210
    %213 = vset.pattern.permute.xlu0 1
    %214 = vperm.xlu0 %213, %v61
    %v215 = vpop.permute.xlu0 %214
    %217 = vset.pattern.permute.xlu0 1
    %218 = vperm.xlu0 %217, %v62
    %v219 = vpop.permute.xlu0 %218
    %v222 = vperm.slane %v188, 0
    %v223 = vperm.slane %v188, 1
    %v224 = vperm.slane %v188, 2
    %v225 = vperm.slane %v188, 3
    %v230 = vmul.f32 %v191, %v222
    %v231 = vmul.f32 %v191, %v223
    %v232 = vmul.f32 %v191, %v224
    %v233 = vmul.f32 %v191, %v225
    %v234 = vmul.f32 %v195, %v222
    %v235 = vmul.f32 %v195, %v223
    %v236 = vmul.f32 %v195, %v224
    %v237 = vmul.f32 %v195, %v225
    %v238 = vmul.f32 %v199, %v222
    %v239 = vmul.f32 %v199, %v223
    %v240 = vmul.f32 %v199, %v224
    %v241 = vmul.f32 %v199, %v225
    %v242 = vmul.f32 %v203, %v222
    %v243 = vmul.f32 %v203, %v223
    %v244 = vmul.f32 %v203, %v224
    %v245 = vmul.f32 %v203, %v225
    %v246 = vmul.f32 %v207, %v222
    %v247 = vmul.f32 %v207, %v223
    %v248 = vmul.f32 %v207, %v224
    %v249 = vmul.f32 %v207, %v225
    %v250 = vmul.f32 %v211, %v222
    %v251 = vmul.f32 %v211, %v223
    %v252 = vmul.f32 %v211, %v224
    %v253 = vmul.f32 %v211, %v225
    %v254 = vmul.f32 %v215, %v222
    %v255 = vmul.f32 %v215, %v223
    %v256 = vmul.f32 %v215, %v224
    %v257 = vmul.f32 %v215, %v225
    %v258 = vmul.f32 %v219, %v222
    %v259 = vmul.f32 %v219, %v223
    %v260 = vmul.f32 %v219, %v224
    %v261 = vmul.f32 %v219, %v225
    %v262 = vadd.f32 %v155, %v230
    %v263 = vadd.f32 %v156, %v231
    %v264 = vadd.f32 %v157, %v232
    %v265 = vadd.f32 %v158, %v233
    %v266 = vadd.f32 %v159, %v234
    %v267 = vadd.f32 %v160, %v235
    %v268 = vadd.f32 %v161, %v236
    %v269 = vadd.f32 %v162, %v237
    %v270 = vadd.f32 %v163, %v238
    %v271 = vadd.f32 %v164, %v239
    %v272 = vadd.f32 %v165, %v240
    %v273 = vadd.f32 %v166, %v241
    %v274 = vadd.f32 %v167, %v242
    %v275 = vadd.f32 %v168, %v243
    %v276 = vadd.f32 %v169, %v244
    %v277 = vadd.f32 %v170, %v245
    %v278 = vadd.f32 %v171, %v246
    %v279 = vadd.f32 %v172, %v247
    %v280 = vadd.f32 %v173, %v248
    %v281 = vadd.f32 %v174, %v249
    %v282 = vadd.f32 %v175, %v250
    %v283 = vadd.f32 %v176, %v251
    %v284 = vadd.f32 %v177, %v252
    %v285 = vadd.f32 %v178, %v253
    %v286 = vadd.f32 %v179, %v254
    %v287 = vadd.f32 %v180, %v255
    %v288 = vadd.f32 %v181, %v256
    %v289 = vadd.f32 %v182, %v257
    %v290 = vadd.f32 %v183, %v258
    %v291 = vadd.f32 %v184, %v259
    %v292 = vadd.f32 %v185, %v260
    %v293 = vadd.f32 %v186, %v261
    %s294 = scalar_lea.vmem %s1, 2
    %v295 = vld [vmem:[%s294] ss:$4 sm:$0xf]
    %296 = vset.pattern.permute.xlu0 2
    %297 = vperm.xlu0 %296, %v55
    %v298 = vpop.permute.xlu0 %297
    %300 = vset.pattern.permute.xlu0 2
    %301 = vperm.xlu0 %300, %v56
    %v302 = vpop.permute.xlu0 %301
    %304 = vset.pattern.permute.xlu0 2
    %305 = vperm.xlu0 %304, %v57
    %v306 = vpop.permute.xlu0 %305
    %308 = vset.pattern.permute.xlu0 2
    %309 = vperm.xlu0 %308, %v58
    %v310 = vpop.permute.xlu0 %309
    %312 = vset.pattern.permute.xlu0 2
    %313 = vperm.xlu0 %312, %v59
    %v314 = vpop.permute.xlu0 %313
    %316 = vset.pattern.permute.xlu0 2
    %317 = vperm.xlu0 %316, %v60
    %v318 = vpop.permute.xlu0 %317
    %320 = vset.pattern.permute.xlu0 2
    %321 = vperm.xlu0 %320, %v61
    %v322 = vpop.permute.xlu0 %321
    %324 = vset.pattern.permute.xlu0 2
    %325 = vperm.xlu0 %324, %v62
    %v326 = vpop.permute.xlu0 %325
    %v329 = vperm.slane %v295, 0
    %v330 = vperm.slane %v295, 1
    %v331 = vperm.slane %v295, 2
    %v332 = vperm.slane %v295, 3
    %v337 = vmul.f32 %v298, %v329
    %v338 = vmul.f32 %v298, %v330
    %v339 = vmul.f32 %v298, %v331
    %v340 = vmul.f32 %v298, %v332
    %v341 = vmul.f32 %v302, %v329
    %v342 = vmul.f32 %v302, %v330
    %v343 = vmul.f32 %v302, %v331
    %v344 = vmul.f32 %v302, %v332
    %v345 = vmul.f32 %v306, %v329
    %v346 = vmul.f32 %v306, %v330
    %v347 = vmul.f32 %v306, %v331
    %v348 = vmul.f32 %v306, %v332
    %v349 = vmul.f32 %v310, %v329
    %v350 = vmul.f32 %v310, %v330
    %v351 = vmul.f32 %v310, %v331
    %v352 = vmul.f32 %v310, %v332
    %v353 = vmul.f32 %v314, %v329
    %v354 = vmul.f32 %v314, %v330
    %v355 = vmul.f32 %v314, %v331
    %v356 = vmul.f32 %v314, %v332
    %v357 = vmul.f32 %v318, %v329
    %v358 = vmul.f32 %v318, %v330
    %v359 = vmul.f32 %v318, %v331
    %v360 = vmul.f32 %v318, %v332
    %v361 = vmul.f32 %v322, %v329
    %v362 = vmul.f32 %v322, %v330
    %v363 = vmul.f32 %v322, %v331
    %v364 = vmul.f32 %v322, %v332
    %v365 = vmul.f32 %v326, %v329
    %v366 = vmul.f32 %v326, %v330
    %v367 = vmul.f32 %v326, %v331
    %v368 = vmul.f32 %v326, %v332
    %v369 = vadd.f32 %v262, %v337
    %v370 = vadd.f32 %v263, %v338
    %v371 = vadd.f32 %v264, %v339
    %v372 = vadd.f32 %v265, %v340
    %v373 = vadd.f32 %v266, %v341
    %v374 = vadd.f32 %v267, %v342
    %v375 = vadd.f32 %v268, %v343
    %v376 = vadd.f32 %v269, %v344
    %v377 = vadd.f32 %v270, %v345
    %v378 = vadd.f32 %v271, %v346
    %v379 = vadd.f32 %v272, %v347
    %v380 = vadd.f32 %v273, %v348
    %v381 = vadd.f32 %v274, %v349
    %v382 = vadd.f32 %v275, %v350
    %v383 = vadd.f32 %v276, %v351
    %v384 = vadd.f32 %v277, %v352
    %v385 = vadd.f32 %v278, %v353
    %v386 = vadd.f32 %v279, %v354
    %v387 = vadd.f32 %v280, %v355
    %v388 = vadd.f32 %v281, %v356
    %v389 = vadd.f32 %v282, %v357
    %v390 = vadd.f32 %v283, %v358
    %v391 = vadd.f32 %v284, %v359
    %v392 = vadd.f32 %v285, %v360
    %v393 = vadd.f32 %v286, %v361
    %v394 = vadd.f32 %v287, %v362
    %v395 = vadd.f32 %v288, %v363
    %v396 = vadd.f32 %v289, %v364
    %v397 = vadd.f32 %v290, %v365
    %v398 = vadd.f32 %v291, %v366
    %v399 = vadd.f32 %v292, %v367
    %v400 = vadd.f32 %v293, %v368
    %401 = vst [vmem:[#allocation2] sm:$0xff] %v369
    %402 = vst [vmem:[#allocation2 + $0x8] sm:$0xff] %v370
    %403 = vst [vmem:[#allocation2 + $0x10] sm:$0xff] %v371
    %404 = vst [vmem:[#allocation2 + $0x18] sm:$0xff] %v372
    %405 = vst [vmem:[#allocation2 + $0x20] sm:$0xff] %v373
    %406 = vst [vmem:[#allocation2 + $0x28] sm:$0xff] %v374
    %407 = vst [vmem:[#allocation2 + $0x30] sm:$0xff] %v375
    %408 = vst [vmem:[#allocation2 + $0x38] sm:$0xff] %v376
    %409 = vst [vmem:[#allocation2 + $0x40] sm:$0xff] %v377
    %410 = vst [vmem:[#allocation2 + $0x48] sm:$0xff] %v378
    %411 = vst [vmem:[#allocation2 + $0x50] sm:$0xff] %v379
    %412 = vst [vmem:[#allocation2 + $0x58] sm:$0xff] %v380
    %413 = vst [vmem:[#allocation2 + $0x60] sm:$0xff] %v381
    %414 = vst [vmem:[#allocation2 + $0x68] sm:$0xff] %v382
    %415 = vst [vmem:[#allocation2 + $0x70] sm:$0xff] %v383
    %416 = vst [vmem:[#allocation2 + $0x78] sm:$0xff] %v384
    %417 = vst [vmem:[#allocation2 + $0x80] sm:$0xff] %v385
    %418 = vst [vmem:[#allocation2 + $0x88] sm:$0xff] %v386
    %419 = vst [vmem:[#allocation2 + $0x90] sm:$0xff] %v387
    %420 = vst [vmem:[#allocation2 + $0x98] sm:$0xff] %v388
    %421 = vst [vmem:[#allocation2 + $0xa0] sm:$0xff] %v389
    %422 = vst [vmem:[#allocation2 + $0xa8] sm:$0xff] %v390
    %423 = vst [vmem:[#allocation2 + $0xb0] sm:$0xff] %v391
    %424 = vst [vmem:[#allocation2 + $0xb8] sm:$0xff] %v392
    %425 = vst [vmem:[#allocation2 + $0xc0] sm:$0xff] %v393
    %426 = vst [vmem:[#allocation2 + $0xc8] sm:$0xff] %v394
    %427 = vst [vmem:[#allocation2 + $0xd0] sm:$0xff] %v395
    %428 = vst [vmem:[#allocation2 + $0xd8] sm:$0xff] %v396
    %429 = vst [vmem:[#allocation2 + $0xe0] sm:$0xff] %v397
    %430 = vst [vmem:[#allocation2 + $0xe8] sm:$0xff] %v398
    %431 = vst [vmem:[#allocation2 + $0xf0] sm:$0xff] %v399
    %432 = vst [vmem:[#allocation2 + $0xf8] sm:$0xff] %v400
    %v433 = vld [vmem:[#allocation3] sm:$0xff]
    %v434 = vld [vmem:[#allocation3 + $0x8] sm:$0xff]
    %v435 = vld [vmem:[#allocation3 + $0x10] sm:$0xff]
    %v436 = vld [vmem:[#allocation3 + $0x18] sm:$0xff]
    %v437 = vld [vmem:[#allocation3 + $0x20] sm:$0xff]
    %v438 = vld [vmem:[#allocation3 + $0x28] sm:$0xff]
    %v439 = vld [vmem:[#allocation3 + $0x30] sm:$0xff]
    %v440 = vld [vmem:[#allocation3 + $0x38] sm:$0xff]
    %v441 = vld [vmem:[#allocation3 + $0x40] sm:$0xff]
    %v442 = vld [vmem:[#allocation3 + $0x48] sm:$0xff]
    %v443 = vld [vmem:[#allocation3 + $0x50] sm:$0xff]
    %v444 = vld [vmem:[#allocation3 + $0x58] sm:$0xff]
    %v445 = vld [vmem:[#allocation3 + $0x60] sm:$0xff]
    %v446 = vld [vmem:[#allocation3 + $0x68] sm:$0xff]
    %v447 = vld [vmem:[#allocation3 + $0x70] sm:$0xff]
    %v448 = vld [vmem:[#allocation3 + $0x78] sm:$0xff]
    %v449 = vld [vmem:[#allocation3 + $0x80] sm:$0xff]
    %v450 = vld [vmem:[#allocation3 + $0x88] sm:$0xff]
    %v451 = vld [vmem:[#allocation3 + $0x90] sm:$0xff]
    %v452 = vld [vmem:[#allocation3 + $0x98] sm:$0xff]
    %v453 = vld [vmem:[#allocation3 + $0xa0] sm:$0xff]
    %v454 = vld [vmem:[#allocation3 + $0xa8] sm:$0xff]
    %v455 = vld [vmem:[#allocation3 + $0xb0] sm:$0xff]
    %v456 = vld [vmem:[#allocation3 + $0xb8] sm:$0xff]
    %v457 = vld [vmem:[#allocation3 + $0xc0] sm:$0xff]
    %v458 = vld [vmem:[#allocation3 + $0xc8] sm:$0xff]
    %v459 = vld [vmem:[#allocation3 + $0xd0] sm:$0xff]
    %v460 = vld [vmem:[#allocation3 + $0xd8] sm:$0xff]
    %v461 = vld [vmem:[#allocation3 + $0xe0] sm:$0xff]
    %v462 = vld [vmem:[#allocation3 + $0xe8] sm:$0xff]
    %v463 = vld [vmem:[#allocation3 + $0xf0] sm:$0xff]
    %v464 = vld [vmem:[#allocation3 + $0xf8] sm:$0xff]
    %v465 = vld [vmem:[#allocation3 + $0x100] sm:$0xff]
    %v466 = vld [vmem:[#allocation3 + $0x108] sm:$0xff]
    %v467 = vld [vmem:[#allocation3 + $0x110] sm:$0xff]
    %v468 = vld [vmem:[#allocation3 + $0x118] sm:$0xff]
    %v469 = vld [vmem:[#allocation3 + $0x120] sm:$0xff]
    %v470 = vld [vmem:[#allocation3 + $0x128] sm:$0xff]
    %v471 = vld [vmem:[#allocation3 + $0x130] sm:$0xff]
    %v472 = vld [vmem:[#allocation3 + $0x138] sm:$0xff]
    %v473 = vld [vmem:[#allocation3 + $0x140] sm:$0xff]
    %v474 = vld [vmem:[#allocation3 + $0x148] sm:$0xff]
    %v475 = vld [vmem:[#allocation3 + $0x150] sm:$0xff]
    %v476 = vld [vmem:[#allocation3 + $0x158] sm:$0xff]
    %v477 = vld [vmem:[#allocation3 + $0x160] sm:$0xff]
    %v478 = vld [vmem:[#allocation3 + $0x168] sm:$0xff]
    %v479 = vld [vmem:[#allocation3 + $0x170] sm:$0xff]
    %v480 = vld [vmem:[#allocation3 + $0x178] sm:$0xff]
    %v481 = vld [vmem:[#allocation3 + $0x180] sm:$0xff]
    %v482 = vld [vmem:[#allocation3 + $0x188] sm:$0xff]
    %v483 = vld [vmem:[#allocation3 + $0x190] sm:$0xff]
    %v484 = vld [vmem:[#allocation3 + $0x198] sm:$0xff]
    %v485 = vld [vmem:[#allocation3 + $0x1a0] sm:$0xff]
    %v486 = vld [vmem:[#allocation3 + $0x1a8] sm:$0xff]
    %v487 = vld [vmem:[#allocation3 + $0x1b0] sm:$0xff]
    %v488 = vld [vmem:[#allocation3 + $0x1b8] sm:$0xff]
    %v489 = vld [vmem:[#allocation3 + $0x1c0] sm:$0xff]
    %v490 = vld [vmem:[#allocation3 + $0x1c8] sm:$0xff]
    %v491 = vld [vmem:[#allocation3 + $0x1d0] sm:$0xff]
    %v492 = vld [vmem:[#allocation3 + $0x1d8] sm:$0xff]
    %v493 = vld [vmem:[#allocation3 + $0x1e0] sm:$0xff]
    %v494 = vld [vmem:[#allocation3 + $0x1e8] sm:$0xff]
    %v495 = vld [vmem:[#allocation3 + $0x1f0] sm:$0xff]
    %v496 = vld [vmem:[#allocation3 + $0x1f8] sm:$0xff]
    %s497 = smul.u32 0, 4
    %s498 = smul.addr %s497, 8
    %s499 = scalar_lea.vmem [#allocation2], %s498
    %v500 = vld [vmem:[%s499] sm:$0xff]
    %v501 = vld [vmem:[%s499 + $0x8] sm:$0xff]
    %v502 = vld [vmem:[%s499 + $0x10] sm:$0xff]
    %v503 = vld [vmem:[%s499 + $0x18] sm:$0xff]
    %504 = vmatpush.msra.mxu0 %v493
    %505 = vmatpush.msra.mxu0 %v489
    %506 = vmatpush.msra.mxu0 %v485
    %507 = vmatpush.msra.mxu0 %v481
    %508 = vmatpush.msra.mxu0 %v477
    %509 = vmatpush.msra.mxu0 %v473
    %510 = vmatpush.msra.mxu0 %v469
    %511 = vmatpush.msra.mxu0 %v465
    %512 = vmatpush.msra.mxu0 %v461
    %513 = vmatpush.msra.mxu0 %v457
    %514 = vmatpush.msra.mxu0 %v453
    %515 = vmatpush.msra.mxu0 %v449
    %516 = vmatpush.msra.mxu0 %v445
    %517 = vmatpush.msra.mxu0 %v441
    %518 = vmatpush.msra.mxu0 %v437
    %519 = vmatpush.msra.mxu0 %v433
    %520 = vmatmul.f32.gmra.mxu0 0.0
    %v521 = vpop.f32.mrf.mxu0
    %v522 = vadd.f32 0.0, %v521
    %523 = vdwg.mxu0
    %524 = vmatpush.msra.mxu0 %v494
    %525 = vmatpush.msra.mxu0 %v490
    %526 = vmatpush.msra.mxu0 %v486
    %527 = vmatpush.msra.mxu0 %v482
    %528 = vmatpush.msra.mxu0 %v478
    %529 = vmatpush.msra.mxu0 %v474
    %530 = vmatpush.msra.mxu0 %v470
    %531 = vmatpush.msra.mxu0 %v466
    %532 = vmatpush.msra.mxu0 %v462
    %533 = vmatpush.msra.mxu0 %v458
    %534 = vmatpush.msra.mxu0 %v454
    %535 = vmatpush.msra.mxu0 %v450
    %536 = vmatpush.msra.mxu0 %v446
    %537 = vmatpush.msra.mxu0 %v442
    %538 = vmatpush.msra.mxu0 %v438
    %539 = vmatpush.msra.mxu0 %v434
    %540 = vmatmul.f32.gmra.mxu0 0.0
    %v541 = vpop.f32.mrf.mxu0
    %v542 = vadd.f32 0.0, %v541
    %543 = vdwg.mxu0
    %544 = vmatpush.msra.mxu0 %v495
    %545 = vmatpush.msra.mxu0 %v491
    %546 = vmatpush.msra.mxu0 %v487
    %547 = vmatpush.msra.mxu0 %v483
    %548 = vmatpush.msra.mxu0 %v479
    %549 = vmatpush.msra.mxu0 %v475
    %550 = vmatpush.msra.mxu0 %v471
    %551 = vmatpush.msra.mxu0 %v467
    %552 = vmatpush.msra.mxu0 %v463
    %553 = vmatpush.msra.mxu0 %v459
    %554 = vmatpush.msra.mxu0 %v455
    %555 = vmatpush.msra.mxu0 %v451
    %556 = vmatpush.msra.mxu0 %v447
    %557 = vmatpush.msra.mxu0 %v443
    %558 = vmatpush.msra.mxu0 %v439
    %559 = vmatpush.msra.mxu0 %v435
    %560 = vmatmul.f32.gmra.mxu0 0.0
    %v561 = vpop.f32.mrf.mxu0
    %v562 = vadd.f32 0.0, %v561
    %563 = vdwg.mxu0
    %564 = vmatpush.msra.mxu0 %v496
    %565 = vmatpush.msra.mxu0 %v492
    %566 = vmatpush.msra.mxu0 %v488
    %567 = vmatpush.msra.mxu0 %v484
    %568 = vmatpush.msra.mxu0 %v480
    %569 = vmatpush.msra.mxu0 %v476
    %570 = vmatpush.msra.mxu0 %v472
    %571 = vmatpush.msra.mxu0 %v468
    %572 = vmatpush.msra.mxu0 %v464
    %573 = vmatpush.msra.mxu0 %v460
    %574 = vmatpush.msra.mxu0 %v456
    %575 = vmatpush.msra.mxu0 %v452
    %576 = vmatpush.msra.mxu0 %v448
    %577 = vmatpush.msra.mxu0 %v444
    %578 = vmatpush.msra.mxu0 %v440
    %579 = vmatpush.msra.mxu0 %v436
    %580 = vmatmul.f32.gmra.mxu0 0.0
    %v581 = vpop.f32.mrf.mxu0
    %v582 = vadd.f32 0.0, %v581
    %583 = vdwg.mxu0
    %v584 = vadd.f32 %v500, %v522
    %v585 = vadd.f32 %v501, %v542
    %v586 = vadd.f32 %v502, %v562
    %v587 = vadd.f32 %v503, %v582
    %v588 = vxor.u32 %v584, 2147483648
    %v589 = vxor.u32 %v585, 2147483648
    %v590 = vxor.u32 %v586, 2147483648
    %v591 = vmul.f32 %v588, 1.442695
    %v592 = vpow.pop %v591
    %v593 = vmul.f32 %v589, 1.442695
    %v594 = vpow.pop %v593
    %v595 = vmul.f32 %v590, 1.442695
    %v596 = vpow.pop %v595
    %v597 = vadd.f32 %v592, 1.0
    %v598 = vadd.f32 %v594, 1.0
    %v599 = vadd.f32 %v596, 1.0
    %v600 = vrcp.pop %v597
    %v601 = vmul.f32 %v597, %v600
    %v602 = vsub.f32 1.0, %v601
    %v603 = vmul.f32 %v600, %v602
    %v604 = vadd.f32 %v600, %v603
    %vm605 = vweird.f32 %v597
    %vm606 = vweird.f32 %v600
    %vm607 = vmor %vm605, %vm606
    %v608 = vsel %vm607, %v600, %v604
    %v609 = vand.u32 2147483647, %v597
    %vm610 = vcmp.eq.f32.partialorder %v609, 8.507059e+37
    %v611 = vand.u32 %v597, 2147483648
    %v612 = vor.u32 1.1754944e-38, %v611
    %v613 = vsel %vm610, %v612, %v608
    %v614 = vmul.f32 1.0, %v613
    %v615 = vrcp.pop %v598
    %v616 = vmul.f32 %v598, %v615
    %v617 = vsub.f32 1.0, %v616
    %v618 = vmul.f32 %v615, %v617
    %v619 = vadd.f32 %v615, %v618
    %vm620 = vweird.f32 %v598
    %vm621 = vweird.f32 %v615
    %vm622 = vmor %vm620, %vm621
    %v623 = vsel %vm622, %v615, %v619
    %v624 = vand.u32 2147483647, %v598
    %vm625 = vcmp.eq.f32.partialorder %v624, 8.507059e+37
    %v626 = vand.u32 %v598, 2147483648
    %v627 = vor.u32 1.1754944e-38, %v626
    %v628 = vsel %vm625, %v627, %v623
    %v629 = vmul.f32 1.0, %v628
    %v630 = vrcp.pop %v599
    %v631 = vmul.f32 %v599, %v630
    %v632 = vsub.f32 1.0, %v631
    %v633 = vmul.f32 %v630, %v632
    %v634 = vadd.f32 %v630, %v633
    %vm635 = vweird.f32 %v599
    %vm636 = vweird.f32 %v630
    %vm637 = vmor %vm635, %vm636
    %v638 = vsel %vm637, %v630, %v634
    %v639 = vand.u32 2147483647, %v599
    %vm640 = vcmp.eq.f32.partialorder %v639, 8.507059e+37
    %v641 = vand.u32 %v599, 2147483648
    %v642 = vor.u32 1.1754944e-38, %v641
    %v643 = vsel %vm640, %v642, %v638
    %v644 = vmul.f32 1.0, %v643
    %v645 = vtanh.pop %v587
    %v646 = vmul.f32 %v629, 0.0
    %v647 = vmul.f32 %v614, %v645
    %v648 = vadd.f32 %v646, %v647
    %v649 = vtanh.pop %v648
    %v650 = vmul.f32 %v644, %v649
    %s651 = smul.u32 1, 4
    %s652 = smul.addr %s651, 8
    %s653 = scalar_lea.vmem [#allocation2], %s652
    %v654 = vld [vmem:[%s653] sm:$0xff]
    %v655 = vld [vmem:[%s653 + $0x8] sm:$0xff]
    %v656 = vld [vmem:[%s653 + $0x10] sm:$0xff]
    %v657 = vld [vmem:[%s653 + $0x18] sm:$0xff]
    %658 = vmatpush.msra.mxu0 %v493
    %659 = vmatpush.msra.mxu0 %v489
    %660 = vmatpush.msra.mxu0 %v485
    %661 = vmatpush.msra.mxu0 %v481
    %662 = vmatpush.msra.mxu0 %v477
    %663 = vmatpush.msra.mxu0 %v473
    %664 = vmatpush.msra.mxu0 %v469
    %665 = vmatpush.msra.mxu0 %v465
    %666 = vmatpush.msra.mxu0 %v461
    %667 = vmatpush.msra.mxu0 %v457
    %668 = vmatpush.msra.mxu0 %v453
    %669 = vmatpush.msra.mxu0 %v449
    %670 = vmatpush.msra.mxu0 %v445
    %671 = vmatpush.msra.mxu0 %v441
    %672 = vmatpush.msra.mxu0 %v437
    %673 = vmatpush.msra.mxu0 %v433
    %674 = vmatmul.f32.gmra.mxu0 %v650
    %v675 = vpop.f32.mrf.mxu0
    %v676 = vadd.f32 0.0, %v675
    %677 = vdwg.mxu0
    %678 = vmatpush.msra.mxu0 %v494
    %679 = vmatpush.msra.mxu0 %v490
    %680 = vmatpush.msra.mxu0 %v486
    %681 = vmatpush.msra.mxu0 %v482
    %682 = vmatpush.msra.mxu0 %v478
    %683 = vmatpush.msra.mxu0 %v474
    %684 = vmatpush.msra.mxu0 %v470
    %685 = vmatpush.msra.mxu0 %v466
    %686 = vmatpush.msra.mxu0 %v462
    %687 = vmatpush.msra.mxu0 %v458
    %688 = vmatpush.msra.mxu0 %v454
    %689 = vmatpush.msra.mxu0 %v450
    %690 = vmatpush.msra.mxu0 %v446
    %691 = vmatpush.msra.mxu0 %v442
    %692 = vmatpush.msra.mxu0 %v438
    %693 = vmatpush.msra.mxu0 %v434
    %694 = vmatmul.f32.gmra.mxu0 %v650
    %v695 = vpop.f32.mrf.mxu0
    %v696 = vadd.f32 0.0, %v695
    %697 = vdwg.mxu0
    %698 = vmatpush.msra.mxu0 %v495
    %699 = vmatpush.msra.mxu0 %v491
    %700 = vmatpush.msra.mxu0 %v487
    %701 = vmatpush.msra.mxu0 %v483
    %702 = vmatpush.msra.mxu0 %v479
    %703 = vmatpush.msra.mxu0 %v475
    %704 = vmatpush.msra.mxu0 %v471
    %705 = vmatpush.msra.mxu0 %v467
    %706 = vmatpush.msra.mxu0 %v463
    %707 = vmatpush.msra.mxu0 %v459
    %708 = vmatpush.msra.mxu0 %v455
    %709 = vmatpush.msra.mxu0 %v451
    %710 = vmatpush.msra.mxu0 %v447
    %711 = vmatpush.msra.mxu0 %v443
    %712 = vmatpush.msra.mxu0 %v439
    %713 = vmatpush.msra.mxu0 %v435
    %714 = vmatmul.f32.gmra.mxu0 %v650
    %v715 = vpop.f32.mrf.mxu0
    %v716 = vadd.f32 0.0, %v715
    %717 = vdwg.mxu0
    %718 = vmatpush.msra.mxu0 %v496
    %719 = vmatpush.msra.mxu0 %v492
    %720 = vmatpush.msra.mxu0 %v488
    %721 = vmatpush.msra.mxu0 %v484
    %722 = vmatpush.msra.mxu0 %v480
    %723 = vmatpush.msra.mxu0 %v476
    %724 = vmatpush.msra.mxu0 %v472
    %725 = vmatpush.msra.mxu0 %v468
    %726 = vmatpush.msra.mxu0 %v464
    %727 = vmatpush.msra.mxu0 %v460
    %728 = vmatpush.msra.mxu0 %v456
    %729 = vmatpush.msra.mxu0 %v452
    %730 = vmatpush.msra.mxu0 %v448
    %731 = vmatpush.msra.mxu0 %v444
    %732 = vmatpush.msra.mxu0 %v440
    %733 = vmatpush.msra.mxu0 %v436
    %734 = vmatmul.f32.gmra.mxu0 %v650
    %v735 = vpop.f32.mrf.mxu0
    %v736 = vadd.f32 0.0, %v735
    %737 = vdwg.mxu0
    %v738 = vadd.f32 %v654, %v676
    %v739 = vadd.f32 %v655, %v696
    %v740 = vadd.f32 %v656, %v716
    %v741 = vadd.f32 %v657, %v736
    %v742 = vxor.u32 %v738, 2147483648
    %v743 = vxor.u32 %v739, 2147483648
    %v744 = vxor.u32 %v740, 2147483648
    %v745 = vmul.f32 %v742, 1.442695
    %v746 = vpow.pop %v745
    %v747 = vmul.f32 %v743, 1.442695
    %v748 = vpow.pop %v747
    %v749 = vmul.f32 %v744, 1.442695
    %v750 = vpow.pop %v749
    %v751 = vadd.f32 %v746, 1.0
    %v752 = vadd.f32 %v748, 1.0
    %v753 = vadd.f32 %v750, 1.0
    %v754 = vrcp.pop %v751
    %v755 = vmul.f32 %v751, %v754
    %v756 = vsub.f32 1.0, %v755
    %v757 = vmul.f32 %v754, %v756
    %v758 = vadd.f32 %v754, %v757
    %vm759 = vweird.f32 %v751
    %vm760 = vweird.f32 %v754
    %vm761 = vmor %vm759, %vm760
    %v762 = vsel %vm761, %v754, %v758
    %v763 = vand.u32 2147483647, %v751
    %vm764 = vcmp.eq.f32.partialorder %v763, 8.507059e+37
    %v765 = vand.u32 %v751, 2147483648
    %v766 = vor.u32 1.1754944e-38, %v765
    %v767 = vsel %vm764, %v766, %v762
    %v768 = vmul.f32 1.0, %v767
    %v769 = vrcp.pop %v752
    %v770 = vmul.f32 %v752, %v769
    %v771 = vsub.f32 1.0, %v770
    %v772 = vmul.f32 %v769, %v771
    %v773 = vadd.f32 %v769, %v772
    %vm774 = vweird.f32 %v752
    %vm775 = vweird.f32 %v769
    %vm776 = vmor %vm774, %vm775
    %v777 = vsel %vm776, %v769, %v773
    %v778 = vand.u32 2147483647, %v752
    %vm779 = vcmp.eq.f32.partialorder %v778, 8.507059e+37
    %v780 = vand.u32 %v752, 2147483648
    %v781 = vor.u32 1.1754944e-38, %v780
    %v782 = vsel %vm779, %v781, %v777
    %v783 = vmul.f32 1.0, %v782
    %v784 = vrcp.pop %v753
    %v785 = vmul.f32 %v753, %v784
    %v786 = vsub.f32 1.0, %v785
    %v787 = vmul.f32 %v784, %v786
    %v788 = vadd.f32 %v784, %v787
    %vm789 = vweird.f32 %v753
    %vm790 = vweird.f32 %v784
    %vm791 = vmor %vm789, %vm790
    %v792 = vsel %vm791, %v784, %v788
    %v793 = vand.u32 2147483647, %v753
    %vm794 = vcmp.eq.f32.partialorder %v793, 8.507059e+37
    %v795 = vand.u32 %v753, 2147483648
    %v796 = vor.u32 1.1754944e-38, %v795
    %v797 = vsel %vm794, %v796, %v792
    %v798 = vmul.f32 1.0, %v797
    %v799 = vtanh.pop %v741
    %v800 = vmul.f32 %v783, %v648
    %v801 = vmul.f32 %v768, %v799
    %v802 = vadd.f32 %v800, %v801
    %v803 = vtanh.pop %v802
    %v804 = vmul.f32 %v798, %v803
    %s805 = smul.u32 2, 4
    %s806 = smul.addr %s805, 8
    %s807 = scalar_lea.vmem [#allocation2], %s806
    %v808 = vld [vmem:[%s807] sm:$0xff]
    %v809 = vld [vmem:[%s807 + $0x8] sm:$0xff]
    %v810 = vld [vmem:[%s807 + $0x10] sm:$0xff]
    %v811 = vld [vmem:[%s807 + $0x18] sm:$0xff]
    %812 = vmatpush.msra.mxu0 %v493
    %813 = vmatpush.msra.mxu0 %v489
    %814 = vmatpush.msra.mxu0 %v485
    %815 = vmatpush.msra.mxu0 %v481
    %816 = vmatpush.msra.mxu0 %v477
    %817 = vmatpush.msra.mxu0 %v473
    %818 = vmatpush.msra.mxu0 %v469
    %819 = vmatpush.msra.mxu0 %v465
    %820 = vmatpush.msra.mxu0 %v461
    %821 = vmatpush.msra.mxu0 %v457
    %822 = vmatpush.msra.mxu0 %v453
    %823 = vmatpush.msra.mxu0 %v449
    %824 = vmatpush.msra.mxu0 %v445
    %825 = vmatpush.msra.mxu0 %v441
    %826 = vmatpush.msra.mxu0 %v437
    %827 = vmatpush.msra.mxu0 %v433
    %828 = vmatmul.f32.gmra.mxu0 %v804
    %v829 = vpop.f32.mrf.mxu0
    %v830 = vadd.f32 0.0, %v829
    %831 = vdwg.mxu0
    %832 = vmatpush.msra.mxu0 %v494
    %833 = vmatpush.msra.mxu0 %v490
    %834 = vmatpush.msra.mxu0 %v486
    %835 = vmatpush.msra.mxu0 %v482
    %836 = vmatpush.msra.mxu0 %v478
    %837 = vmatpush.msra.mxu0 %v474
    %838 = vmatpush.msra.mxu0 %v470
    %839 = vmatpush.msra.mxu0 %v466
    %840 = vmatpush.msra.mxu0 %v462
    %841 = vmatpush.msra.mxu0 %v458
    %842 = vmatpush.msra.mxu0 %v454
    %843 = vmatpush.msra.mxu0 %v450
    %844 = vmatpush.msra.mxu0 %v446
    %845 = vmatpush.msra.mxu0 %v442
    %846 = vmatpush.msra.mxu0 %v438
    %847 = vmatpush.msra.mxu0 %v434
    %848 = vmatmul.f32.gmra.mxu0 %v804
    %v849 = vpop.f32.mrf.mxu0
    %v850 = vadd.f32 0.0, %v849
    %851 = vdwg.mxu0
    %852 = vmatpush.msra.mxu0 %v495
    %853 = vmatpush.msra.mxu0 %v491
    %854 = vmatpush.msra.mxu0 %v487
    %855 = vmatpush.msra.mxu0 %v483
    %856 = vmatpush.msra.mxu0 %v479
    %857 = vmatpush.msra.mxu0 %v475
    %858 = vmatpush.msra.mxu0 %v471
    %859 = vmatpush.msra.mxu0 %v467
    %860 = vmatpush.msra.mxu0 %v463
    %861 = vmatpush.msra.mxu0 %v459
    %862 = vmatpush.msra.mxu0 %v455
    %863 = vmatpush.msra.mxu0 %v451
    %864 = vmatpush.msra.mxu0 %v447
    %865 = vmatpush.msra.mxu0 %v443
    %866 = vmatpush.msra.mxu0 %v439
    %867 = vmatpush.msra.mxu0 %v435
    %868 = vmatmul.f32.gmra.mxu0 %v804
    %v869 = vpop.f32.mrf.mxu0
    %v870 = vadd.f32 0.0, %v869
    %871 = vdwg.mxu0
    %872 = vmatpush.msra.mxu0 %v496
    %873 = vmatpush.msra.mxu0 %v492
    %874 = vmatpush.msra.mxu0 %v488
    %875 = vmatpush.msra.mxu0 %v484
    %876 = vmatpush.msra.mxu0 %v480
    %877 = vmatpush.msra.mxu0 %v476
    %878 = vmatpush.msra.mxu0 %v472
    %879 = vmatpush.msra.mxu0 %v468
    %880 = vmatpush.msra.mxu0 %v464
    %881 = vmatpush.msra.mxu0 %v460
    %882 = vmatpush.msra.mxu0 %v456
    %883 = vmatpush.msra.mxu0 %v452
    %884 = vmatpush.msra.mxu0 %v448
    %885 = vmatpush.msra.mxu0 %v444
    %886 = vmatpush.msra.mxu0 %v440
    %887 = vmatpush.msra.mxu0 %v436
    %888 = vmatmul.f32.gmra.mxu0 %v804
    %v889 = vpop.f32.mrf.mxu0
    %v890 = vadd.f32 0.0, %v889
    %891 = vdwg.mxu0
    %v892 = vadd.f32 %v808, %v830
    %v893 = vadd.f32 %v809, %v850
    %v894 = vadd.f32 %v810, %v870
    %v895 = vadd.f32 %v811, %v890
    %v896 = vxor.u32 %v892, 2147483648
    %v897 = vxor.u32 %v893, 2147483648
    %v898 = vxor.u32 %v894, 2147483648
    %v899 = vmul.f32 %v896, 1.442695
    %v900 = vpow.pop %v899
    %v901 = vmul.f32 %v897, 1.442695
    %v902 = vpow.pop %v901
    %v903 = vmul.f32 %v898, 1.442695
    %v904 = vpow.pop %v903
    %v905 = vadd.f32 %v900, 1.0
    %v906 = vadd.f32 %v902, 1.0
    %v907 = vadd.f32 %v904, 1.0
    %v908 = vrcp.pop %v905
    %v909 = vmul.f32 %v905, %v908
    %v910 = vsub.f32 1.0, %v909
    %v911 = vmul.f32 %v908, %v910
    %v912 = vadd.f32 %v908, %v911
    %vm913 = vweird.f32 %v905
    %vm914 = vweird.f32 %v908
    %vm915 = vmor %vm913, %vm914
    %v916 = vsel %vm915, %v908, %v912
    %v917 = vand.u32 2147483647, %v905
    %vm918 = vcmp.eq.f32.partialorder %v917, 8.507059e+37
    %v919 = vand.u32 %v905, 2147483648
    %v920 = vor.u32 1.1754944e-38, %v919
    %v921 = vsel %vm918, %v920, %v916
    %v922 = vmul.f32 1.0, %v921
    %v923 = vrcp.pop %v906
    %v924 = vmul.f32 %v906, %v923
    %v925 = vsub.f32 1.0, %v924
    %v926 = vmul.f32 %v923, %v925
    %v927 = vadd.f32 %v923, %v926
    %vm928 = vweird.f32 %v906
    %vm929 = vweird.f32 %v923
    %vm930 = vmor %vm928, %vm929
    %v931 = vsel %vm930, %v923, %v927
    %v932 = vand.u32 2147483647, %v906
    %vm933 = vcmp.eq.f32.partialorder %v932, 8.507059e+37
    %v934 = vand.u32 %v906, 2147483648
    %v935 = vor.u32 1.1754944e-38, %v934
    %v936 = vsel %vm933, %v935, %v931
    %v937 = vmul.f32 1.0, %v936
    %v938 = vrcp.pop %v907
    %v939 = vmul.f32 %v907, %v938
    %v940 = vsub.f32 1.0, %v939
    %v941 = vmul.f32 %v938, %v940
    %v942 = vadd.f32 %v938, %v941
    %vm943 = vweird.f32 %v907
    %vm944 = vweird.f32 %v938
    %vm945 = vmor %vm943, %vm944
    %v946 = vsel %vm945, %v938, %v942
    %v947 = vand.u32 2147483647, %v907
    %vm948 = vcmp.eq.f32.partialorder %v947, 8.507059e+37
    %v949 = vand.u32 %v907, 2147483648
    %v950 = vor.u32 1.1754944e-38, %v949
    %v951 = vsel %vm948, %v950, %v946
    %v952 = vmul.f32 1.0, %v951
    %v953 = vtanh.pop %v895
    %v954 = vmul.f32 %v937, %v802
    %v955 = vmul.f32 %v922, %v953
    %v956 = vadd.f32 %v954, %v955
    %v957 = vtanh.pop %v956
    %v958 = vmul.f32 %v952, %v957
    %s959 = smul.u32 3, 4
    %s960 = smul.addr %s959, 8
    %s961 = scalar_lea.vmem [#allocation2], %s960
    %v962 = vld [vmem:[%s961] sm:$0xff]
    %v963 = vld [vmem:[%s961 + $0x8] sm:$0xff]
    %v964 = vld [vmem:[%s961 + $0x10] sm:$0xff]
    %v965 = vld [vmem:[%s961 + $0x18] sm:$0xff]
    %966 = vmatpush.msra.mxu0 %v493
    %967 = vmatpush.msra.mxu0 %v489
    %968 = vmatpush.msra.mxu0 %v485
    %969 = vmatpush.msra.mxu0 %v481
    %970 = vmatpush.msra.mxu0 %v477
    %971 = vmatpush.msra.mxu0 %v473
    %972 = vmatpush.msra.mxu0 %v469
    %973 = vmatpush.msra.mxu0 %v465
    %974 = vmatpush.msra.mxu0 %v461
    %975 = vmatpush.msra.mxu0 %v457
    %976 = vmatpush.msra.mxu0 %v453
    %977 = vmatpush.msra.mxu0 %v449
    %978 = vmatpush.msra.mxu0 %v445
    %979 = vmatpush.msra.mxu0 %v441
    %980 = vmatpush.msra.mxu0 %v437
    %981 = vmatpush.msra.mxu0 %v433
    %982 = vmatmul.f32.gmra.mxu0 %v958
    %v983 = vpop.f32.mrf.mxu0
    %v984 = vadd.f32 0.0, %v983
    %985 = vdwg.mxu0
    %986 = vmatpush.msra.mxu0 %v494
    %987 = vmatpush.msra.mxu0 %v490
    %988 = vmatpush.msra.mxu0 %v486
    %989 = vmatpush.msra.mxu0 %v482
    %990 = vmatpush.msra.mxu0 %v478
    %991 = vmatpush.msra.mxu0 %v474
    %992 = vmatpush.msra.mxu0 %v470
    %993 = vmatpush.msra.mxu0 %v466
    %994 = vmatpush.msra.mxu0 %v462
    %995 = vmatpush.msra.mxu0 %v458
    %996 = vmatpush.msra.mxu0 %v454
    %997 = vmatpush.msra.mxu0 %v450
    %998 = vmatpush.msra.mxu0 %v446
    %999 = vmatpush.msra.mxu0 %v442
    %1000 = vmatpush.msra.mxu0 %v438
    %1001 = vmatpush.msra.mxu0 %v434
    %1002 = vmatmul.f32.gmra.mxu0 %v958
    %v1003 = vpop.f32.mrf.mxu0
    %v1004 = vadd.f32 0.0, %v1003
    %1005 = vdwg.mxu0
    %1006 = vmatpush.msra.mxu0 %v495
    %1007 = vmatpush.msra.mxu0 %v491
    %1008 = vmatpush.msra.mxu0 %v487
    %1009 = vmatpush.msra.mxu0 %v483
    %1010 = vmatpush.msra.mxu0 %v479
    %1011 = vmatpush.msra.mxu0 %v475
    %1012 = vmatpush.msra.mxu0 %v471
    %1013 = vmatpush.msra.mxu0 %v467
    %1014 = vmatpush.msra.mxu0 %v463
    %1015 = vmatpush.msra.mxu0 %v459
    %1016 = vmatpush.msra.mxu0 %v455
    %1017 = vmatpush.msra.mxu0 %v451
    %1018 = vmatpush.msra.mxu0 %v447
    %1019 = vmatpush.msra.mxu0 %v443
    %1020 = vmatpush.msra.mxu0 %v439
    %1021 = vmatpush.msra.mxu0 %v435
    %1022 = vmatmul.f32.gmra.mxu0 %v958
    %v1023 = vpop.f32.mrf.mxu0
    %v1024 = vadd.f32 0.0, %v1023
    %1025 = vdwg.mxu0
    %1026 = vmatpush.msra.mxu0 %v496
    %1027 = vmatpush.msra.mxu0 %v492
    %1028 = vmatpush.msra.mxu0 %v488
    %1029 = vmatpush.msra.mxu0 %v484
    %1030 = vmatpush.msra.mxu0 %v480
    %1031 = vmatpush.msra.mxu0 %v476
    %1032 = vmatpush.msra.mxu0 %v472
    %1033 = vmatpush.msra.mxu0 %v468
    %1034 = vmatpush.msra.mxu0 %v464
    %1035 = vmatpush.msra.mxu0 %v460
    %1036 = vmatpush.msra.mxu0 %v456
    %1037 = vmatpush.msra.mxu0 %v452
    %1038 = vmatpush.msra.mxu0 %v448
    %1039 = vmatpush.msra.mxu0 %v444
    %1040 = vmatpush.msra.mxu0 %v440
    %1041 = vmatpush.msra.mxu0 %v436
    %1042 = vmatmul.f32.gmra.mxu0 %v958
    %v1043 = vpop.f32.mrf.mxu0
    %v1044 = vadd.f32 0.0, %v1043
    %1045 = vdwg.mxu0
    %v1046 = vadd.f32 %v962, %v984
    %v1047 = vadd.f32 %v963, %v1004
    %v1048 = vadd.f32 %v964, %v1024
    %v1049 = vadd.f32 %v965, %v1044
    %v1050 = vxor.u32 %v1046, 2147483648
    %v1051 = vxor.u32 %v1047, 2147483648
    %v1052 = vxor.u32 %v1048, 2147483648
    %v1053 = vmul.f32 %v1050, 1.442695
    %v1054 = vpow.pop %v1053
    %v1055 = vmul.f32 %v1051, 1.442695
    %v1056 = vpow.pop %v1055
    %v1057 = vmul.f32 %v1052, 1.442695
    %v1058 = vpow.pop %v1057
    %v1059 = vadd.f32 %v1054, 1.0
    %v1060 = vadd.f32 %v1056, 1.0
    %v1061 = vadd.f32 %v1058, 1.0
    %v1062 = vrcp.pop %v1059
    %v1063 = vmul.f32 %v1059, %v1062
    %v1064 = vsub.f32 1.0, %v1063
    %v1065 = vmul.f32 %v1062, %v1064
    %v1066 = vadd.f32 %v1062, %v1065
    %vm1067 = vweird.f32 %v1059
    %vm1068 = vweird.f32 %v1062
    %vm1069 = vmor %vm1067, %vm1068
    %v1070 = vsel %vm1069, %v1062, %v1066
    %v1071 = vand.u32 2147483647, %v1059
    %vm1072 = vcmp.eq.f32.partialorder %v1071, 8.507059e+37
    %v1073 = vand.u32 %v1059, 2147483648
    %v1074 = vor.u32 1.1754944e-38, %v1073
    %v1075 = vsel %vm1072, %v1074, %v1070
    %v1076 = vmul.f32 1.0, %v1075
    %v1077 = vrcp.pop %v1060
    %v1078 = vmul.f32 %v1060, %v1077
    %v1079 = vsub.f32 1.0, %v1078
    %v1080 = vmul.f32 %v1077, %v1079
    %v1081 = vadd.f32 %v1077, %v1080
    %vm1082 = vweird.f32 %v1060
    %vm1083 = vweird.f32 %v1077
    %vm1084 = vmor %vm1082, %vm1083
    %v1085 = vsel %vm1084, %v1077, %v1081
    %v1086 = vand.u32 2147483647, %v1060
    %vm1087 = vcmp.eq.f32.partialorder %v1086, 8.507059e+37
    %v1088 = vand.u32 %v1060, 2147483648
    %v1089 = vor.u32 1.1754944e-38, %v1088
    %v1090 = vsel %vm1087, %v1089, %v1085
    %v1091 = vmul.f32 1.0, %v1090
    %v1092 = vrcp.pop %v1061
    %v1093 = vmul.f32 %v1061, %v1092
    %v1094 = vsub.f32 1.0, %v1093
    %v1095 = vmul.f32 %v1092, %v1094
    %v1096 = vadd.f32 %v1092, %v1095
    %vm1097 = vweird.f32 %v1061
    %vm1098 = vweird.f32 %v1092
    %vm1099 = vmor %vm1097, %vm1098
    %v1100 = vsel %vm1099, %v1092, %v1096
    %v1101 = vand.u32 2147483647, %v1061
    %vm1102 = vcmp.eq.f32.partialorder %v1101, 8.507059e+37
    %v1103 = vand.u32 %v1061, 2147483648
    %v1104 = vor.u32 1.1754944e-38, %v1103
    %v1105 = vsel %vm1102, %v1104, %v1100
    %v1106 = vmul.f32 1.0, %v1105
    %v1107 = vtanh.pop %v1049
    %v1108 = vmul.f32 %v1091, %v956
    %v1109 = vmul.f32 %v1076, %v1107
    %v1110 = vadd.f32 %v1108, %v1109
    %v1111 = vtanh.pop %v1110
    %v1112 = vmul.f32 %v1106, %v1111
    %s1113 = smul.u32 4, 4
    %s1114 = smul.addr %s1113, 8
    %s1115 = scalar_lea.vmem [#allocation2], %s1114
    %v1116 = vld [vmem:[%s1115] sm:$0xff]
    %v1117 = vld [vmem:[%s1115 + $0x8] sm:$0xff]
    %v1118 = vld [vmem:[%s1115 + $0x10] sm:$0xff]
    %v1119 = vld [vmem:[%s1115 + $0x18] sm:$0xff]
    %1120 = vmatpush.msra.mxu0 %v493
    %1121 = vmatpush.msra.mxu0 %v489
    %1122 = vmatpush.msra.mxu0 %v485
    %1123 = vmatpush.msra.mxu0 %v481
    %1124 = vmatpush.msra.mxu0 %v477
    %1125 = vmatpush.msra.mxu0 %v473
    %1126 = vmatpush.msra.mxu0 %v469
    %1127 = vmatpush.msra.mxu0 %v465
    %1128 = vmatpush.msra.mxu0 %v461
    %1129 = vmatpush.msra.mxu0 %v457
    %1130 = vmatpush.msra.mxu0 %v453
    %1131 = vmatpush.msra.mxu0 %v449
    %1132 = vmatpush.msra.mxu0 %v445
    %1133 = vmatpush.msra.mxu0 %v441
    %1134 = vmatpush.msra.mxu0 %v437
    %1135 = vmatpush.msra.mxu0 %v433
    %1136 = vmatmul.f32.gmra.mxu0 %v1112
    %v1137 = vpop.f32.mrf.mxu0
    %v1138 = vadd.f32 0.0, %v1137
    %1139 = vdwg.mxu0
    %1140 = vmatpush.msra.mxu0 %v494
    %1141 = vmatpush.msra.mxu0 %v490
    %1142 = vmatpush.msra.mxu0 %v486
    %1143 = vmatpush.msra.mxu0 %v482
    %1144 = vmatpush.msra.mxu0 %v478
    %1145 = vmatpush.msra.mxu0 %v474
    %1146 = vmatpush.msra.mxu0 %v470
    %1147 = vmatpush.msra.mxu0 %v466
    %1148 = vmatpush.msra.mxu0 %v462
    %1149 = vmatpush.msra.mxu0 %v458
    %1150 = vmatpush.msra.mxu0 %v454
    %1151 = vmatpush.msra.mxu0 %v450
    %1152 = vmatpush.msra.mxu0 %v446
    %1153 = vmatpush.msra.mxu0 %v442
    %1154 = vmatpush.msra.mxu0 %v438
    %1155 = vmatpush.msra.mxu0 %v434
    %1156 = vmatmul.f32.gmra.mxu0 %v1112
    %v1157 = vpop.f32.mrf.mxu0
    %v1158 = vadd.f32 0.0, %v1157
    %1159 = vdwg.mxu0
    %1160 = vmatpush.msra.mxu0 %v495
    %1161 = vmatpush.msra.mxu0 %v491
    %1162 = vmatpush.msra.mxu0 %v487
    %1163 = vmatpush.msra.mxu0 %v483
    %1164 = vmatpush.msra.mxu0 %v479
    %1165 = vmatpush.msra.mxu0 %v475
    %1166 = vmatpush.msra.mxu0 %v471
    %1167 = vmatpush.msra.mxu0 %v467
    %1168 = vmatpush.msra.mxu0 %v463
    %1169 = vmatpush.msra.mxu0 %v459
    %1170 = vmatpush.msra.mxu0 %v455
    %1171 = vmatpush.msra.mxu0 %v451
    %1172 = vmatpush.msra.mxu0 %v447
    %1173 = vmatpush.msra.mxu0 %v443
    %1174 = vmatpush.msra.mxu0 %v439
    %1175 = vmatpush.msra.mxu0 %v435
    %1176 = vmatmul.f32.gmra.mxu0 %v1112
    %v1177 = vpop.f32.mrf.mxu0
    %v1178 = vadd.f32 0.0, %v1177
    %1179 = vdwg.mxu0
    %1180 = vmatpush.msra.mxu0 %v496
    %1181 = vmatpush.msra.mxu0 %v492
    %1182 = vmatpush.msra.mxu0 %v488
    %1183 = vmatpush.msra.mxu0 %v484
    %1184 = vmatpush.msra.mxu0 %v480
    %1185 = vmatpush.msra.mxu0 %v476
    %1186 = vmatpush.msra.mxu0 %v472
    %1187 = vmatpush.msra.mxu0 %v468
    %1188 = vmatpush.msra.mxu0 %v464
    %1189 = vmatpush.msra.mxu0 %v460
    %1190 = vmatpush.msra.mxu0 %v456
    %1191 = vmatpush.msra.mxu0 %v452
    %1192 = vmatpush.msra.mxu0 %v448
    %1193 = vmatpush.msra.mxu0 %v444
    %1194 = vmatpush.msra.mxu0 %v440
    %1195 = vmatpush.msra.mxu0 %v436
    %1196 = vmatmul.f32.gmra.mxu0 %v1112
    %v1197 = vpop.f32.mrf.mxu0
    %v1198 = vadd.f32 0.0, %v1197
    %1199 = vdwg.mxu0
    %v1200 = vadd.f32 %v1116, %v1138
    %v1201 = vadd.f32 %v1117, %v1158
    %v1202 = vadd.f32 %v1118, %v1178
    %v1203 = vadd.f32 %v1119, %v1198
    %v1204 = vxor.u32 %v1200, 2147483648
    %v1205 = vxor.u32 %v1201, 2147483648
    %v1206 = vxor.u32 %v1202, 2147483648
    %v1207 = vmul.f32 %v1204, 1.442695
    %v1208 = vpow.pop %v1207
    %v1209 = vmul.f32 %v1205, 1.442695
    %v1210 = vpow.pop %v1209
    %v1211 = vmul.f32 %v1206, 1.442695
    %v1212 = vpow.pop %v1211
    %v1213 = vadd.f32 %v1208, 1.0
    %v1214 = vadd.f32 %v1210, 1.0
    %v1215 = vadd.f32 %v1212, 1.0
    %v1216 = vrcp.pop %v1213
    %v1217 = vmul.f32 %v1213, %v1216
    %v1218 = vsub.f32 1.0, %v1217
    %v1219 = vmul.f32 %v1216, %v1218
    %v1220 = vadd.f32 %v1216, %v1219
    %vm1221 = vweird.f32 %v1213
    %vm1222 = vweird.f32 %v1216
    %vm1223 = vmor %vm1221, %vm1222
    %v1224 = vsel %vm1223, %v1216, %v1220
    %v1225 = vand.u32 2147483647, %v1213
    %vm1226 = vcmp.eq.f32.partialorder %v1225, 8.507059e+37
    %v1227 = vand.u32 %v1213, 2147483648
    %v1228 = vor.u32 1.1754944e-38, %v1227
    %v1229 = vsel %vm1226, %v1228, %v1224
    %v1230 = vmul.f32 1.0, %v1229
    %v1231 = vrcp.pop %v1214
    %v1232 = vmul.f32 %v1214, %v1231
    %v1233 = vsub.f32 1.0, %v1232
    %v1234 = vmul.f32 %v1231, %v1233
    %v1235 = vadd.f32 %v1231, %v1234
    %vm1236 = vweird.f32 %v1214
    %vm1237 = vweird.f32 %v1231
    %vm1238 = vmor %vm1236, %vm1237
    %v1239 = vsel %vm1238, %v1231, %v1235
    %v1240 = vand.u32 2147483647, %v1214
    %vm1241 = vcmp.eq.f32.partialorder %v1240, 8.507059e+37
    %v1242 = vand.u32 %v1214, 2147483648
    %v1243 = vor.u32 1.1754944e-38, %v1242
    %v1244 = vsel %vm1241, %v1243, %v1239
    %v1245 = vmul.f32 1.0, %v1244
    %v1246 = vrcp.pop %v1215
    %v1247 = vmul.f32 %v1215, %v1246
    %v1248 = vsub.f32 1.0, %v1247
    %v1249 = vmul.f32 %v1246, %v1248
    %v1250 = vadd.f32 %v1246, %v1249
    %vm1251 = vweird.f32 %v1215
    %vm1252 = vweird.f32 %v1246
    %vm1253 = vmor %vm1251, %vm1252
    %v1254 = vsel %vm1253, %v1246, %v1250
    %v1255 = vand.u32 2147483647, %v1215
    %vm1256 = vcmp.eq.f32.partialorder %v1255, 8.507059e+37
    %v1257 = vand.u32 %v1215, 2147483648
    %v1258 = vor.u32 1.1754944e-38, %v1257
    %v1259 = vsel %vm1256, %v1258, %v1254
    %v1260 = vmul.f32 1.0, %v1259
    %v1261 = vtanh.pop %v1203
    %v1262 = vmul.f32 %v1245, %v1110
    %v1263 = vmul.f32 %v1230, %v1261
    %v1264 = vadd.f32 %v1262, %v1263
    %v1265 = vtanh.pop %v1264
    %v1266 = vmul.f32 %v1260, %v1265
    %s1267 = smul.u32 5, 4
    %s1268 = smul.addr %s1267, 8
    %s1269 = scalar_lea.vmem [#allocation2], %s1268
    %v1270 = vld [vmem:[%s1269] sm:$0xff]
    %v1271 = vld [vmem:[%s1269 + $0x8] sm:$0xff]
    %v1272 = vld [vmem:[%s1269 + $0x10] sm:$0xff]
    %v1273 = vld [vmem:[%s1269 + $0x18] sm:$0xff]
    %1274 = vmatpush.msra.mxu0 %v493
    %1275 = vmatpush.msra.mxu0 %v489
    %1276 = vmatpush.msra.mxu0 %v485
    %1277 = vmatpush.msra.mxu0 %v481
    %1278 = vmatpush.msra.mxu0 %v477
    %1279 = vmatpush.msra.mxu0 %v473
    %1280 = vmatpush.msra.mxu0 %v469
    %1281 = vmatpush.msra.mxu0 %v465
    %1282 = vmatpush.msra.mxu0 %v461
    %1283 = vmatpush.msra.mxu0 %v457
    %1284 = vmatpush.msra.mxu0 %v453
    %1285 = vmatpush.msra.mxu0 %v449
    %1286 = vmatpush.msra.mxu0 %v445
    %1287 = vmatpush.msra.mxu0 %v441
    %1288 = vmatpush.msra.mxu0 %v437
    %1289 = vmatpush.msra.mxu0 %v433
    %1290 = vmatmul.f32.gmra.mxu0 %v1266
    %v1291 = vpop.f32.mrf.mxu0
    %v1292 = vadd.f32 0.0, %v1291
    %1293 = vdwg.mxu0
    %1294 = vmatpush.msra.mxu0 %v494
    %1295 = vmatpush.msra.mxu0 %v490
    %1296 = vmatpush.msra.mxu0 %v486
    %1297 = vmatpush.msra.mxu0 %v482
    %1298 = vmatpush.msra.mxu0 %v478
    %1299 = vmatpush.msra.mxu0 %v474
    %1300 = vmatpush.msra.mxu0 %v470
    %1301 = vmatpush.msra.mxu0 %v466
    %1302 = vmatpush.msra.mxu0 %v462
    %1303 = vmatpush.msra.mxu0 %v458
    %1304 = vmatpush.msra.mxu0 %v454
    %1305 = vmatpush.msra.mxu0 %v450
    %1306 = vmatpush.msra.mxu0 %v446
    %1307 = vmatpush.msra.mxu0 %v442
    %1308 = vmatpush.msra.mxu0 %v438
    %1309 = vmatpush.msra.mxu0 %v434
    %1310 = vmatmul.f32.gmra.mxu0 %v1266
    %v1311 = vpop.f32.mrf.mxu0
    %v1312 = vadd.f32 0.0, %v1311
    %1313 = vdwg.mxu0
    %1314 = vmatpush.msra.mxu0 %v495
    %1315 = vmatpush.msra.mxu0 %v491
    %1316 = vmatpush.msra.mxu0 %v487
    %1317 = vmatpush.msra.mxu0 %v483
    %1318 = vmatpush.msra.mxu0 %v479
    %1319 = vmatpush.msra.mxu0 %v475
    %1320 = vmatpush.msra.mxu0 %v471
    %1321 = vmatpush.msra.mxu0 %v467
    %1322 = vmatpush.msra.mxu0 %v463
    %1323 = vmatpush.msra.mxu0 %v459
    %1324 = vmatpush.msra.mxu0 %v455
    %1325 = vmatpush.msra.mxu0 %v451
    %1326 = vmatpush.msra.mxu0 %v447
    %1327 = vmatpush.msra.mxu0 %v443
    %1328 = vmatpush.msra.mxu0 %v439
    %1329 = vmatpush.msra.mxu0 %v435
    %1330 = vmatmul.f32.gmra.mxu0 %v1266
    %v1331 = vpop.f32.mrf.mxu0
    %v1332 = vadd.f32 0.0, %v1331
    %1333 = vdwg.mxu0
    %1334 = vmatpush.msra.mxu0 %v496
    %1335 = vmatpush.msra.mxu0 %v492
    %1336 = vmatpush.msra.mxu0 %v488
    %1337 = vmatpush.msra.mxu0 %v484
    %1338 = vmatpush.msra.mxu0 %v480
    %1339 = vmatpush.msra.mxu0 %v476
    %1340 = vmatpush.msra.mxu0 %v472
    %1341 = vmatpush.msra.mxu0 %v468
    %1342 = vmatpush.msra.mxu0 %v464
    %1343 = vmatpush.msra.mxu0 %v460
    %1344 = vmatpush.msra.mxu0 %v456
    %1345 = vmatpush.msra.mxu0 %v452
    %1346 = vmatpush.msra.mxu0 %v448
    %1347 = vmatpush.msra.mxu0 %v444
    %1348 = vmatpush.msra.mxu0 %v440
    %1349 = vmatpush.msra.mxu0 %v436
    %1350 = vmatmul.f32.gmra.mxu0 %v1266
    %v1351 = vpop.f32.mrf.mxu0
    %v1352 = vadd.f32 0.0, %v1351
    %1353 = vdwg.mxu0
    %v1354 = vadd.f32 %v1270, %v1292
    %v1355 = vadd.f32 %v1271, %v1312
    %v1356 = vadd.f32 %v1272, %v1332
    %v1357 = vadd.f32 %v1273, %v1352
    %v1358 = vxor.u32 %v1354, 2147483648
    %v1359 = vxor.u32 %v1355, 2147483648
    %v1360 = vxor.u32 %v1356, 2147483648
    %v1361 = vmul.f32 %v1358, 1.442695
    %v1362 = vpow.pop %v1361
    %v1363 = vmul.f32 %v1359, 1.442695
    %v1364 = vpow.pop %v1363
    %v1365 = vmul.f32 %v1360, 1.442695
    %v1366 = vpow.pop %v1365
    %v1367 = vadd.f32 %v1362, 1.0
    %v1368 = vadd.f32 %v1364, 1.0
    %v1369 = vadd.f32 %v1366, 1.0
    %v1370 = vrcp.pop %v1367
    %v1371 = vmul.f32 %v1367, %v1370
    %v1372 = vsub.f32 1.0, %v1371
    %v1373 = vmul.f32 %v1370, %v1372
    %v1374 = vadd.f32 %v1370, %v1373
    %vm1375 = vweird.f32 %v1367
    %vm1376 = vweird.f32 %v1370
    %vm1377 = vmor %vm1375, %vm1376
    %v1378 = vsel %vm1377, %v1370, %v1374
    %v1379 = vand.u32 2147483647, %v1367
    %vm1380 = vcmp.eq.f32.partialorder %v1379, 8.507059e+37
    %v1381 = vand.u32 %v1367, 2147483648
    %v1382 = vor.u32 1.1754944e-38, %v1381
    %v1383 = vsel %vm1380, %v1382, %v1378
    %v1384 = vmul.f32 1.0, %v1383
    %v1385 = vrcp.pop %v1368
    %v1386 = vmul.f32 %v1368, %v1385
    %v1387 = vsub.f32 1.0, %v1386
    %v1388 = vmul.f32 %v1385, %v1387
    %v1389 = vadd.f32 %v1385, %v1388
    %vm1390 = vweird.f32 %v1368
    %vm1391 = vweird.f32 %v1385
    %vm1392 = vmor %vm1390, %vm1391
    %v1393 = vsel %vm1392, %v1385, %v1389
    %v1394 = vand.u32 2147483647, %v1368
    %vm1395 = vcmp.eq.f32.partialorder %v1394, 8.507059e+37
    %v1396 = vand.u32 %v1368, 2147483648
    %v1397 = vor.u32 1.1754944e-38, %v1396
    %v1398 = vsel %vm1395, %v1397, %v1393
    %v1399 = vmul.f32 1.0, %v1398
    %v1400 = vrcp.pop %v1369
    %v1401 = vmul.f32 %v1369, %v1400
    %v1402 = vsub.f32 1.0, %v1401
    %v1403 = vmul.f32 %v1400, %v1402
    %v1404 = vadd.f32 %v1400, %v1403
    %vm1405 = vweird.f32 %v1369
    %vm1406 = vweird.f32 %v1400
    %vm1407 = vmor %vm1405, %vm1406
    %v1408 = vsel %vm1407, %v1400, %v1404
    %v1409 = vand.u32 2147483647, %v1369
    %vm1410 = vcmp.eq.f32.partialorder %v1409, 8.507059e+37
    %v1411 = vand.u32 %v1369, 2147483648
    %v1412 = vor.u32 1.1754944e-38, %v1411
    %v1413 = vsel %vm1410, %v1412, %v1408
    %v1414 = vmul.f32 1.0, %v1413
    %v1415 = vtanh.pop %v1357
    %v1416 = vmul.f32 %v1399, %v1264
    %v1417 = vmul.f32 %v1384, %v1415
    %v1418 = vadd.f32 %v1416, %v1417
    %v1419 = vtanh.pop %v1418
    %v1420 = vmul.f32 %v1414, %v1419
    %s1421 = smul.u32 6, 4
    %s1422 = smul.addr %s1421, 8
    %s1423 = scalar_lea.vmem [#allocation2], %s1422
    %v1424 = vld [vmem:[%s1423] sm:$0xff]
    %v1425 = vld [vmem:[%s1423 + $0x8] sm:$0xff]
    %v1426 = vld [vmem:[%s1423 + $0x10] sm:$0xff]
    %v1427 = vld [vmem:[%s1423 + $0x18] sm:$0xff]
    %1428 = vmatpush.msra.mxu0 %v493
    %1429 = vmatpush.msra.mxu0 %v489
    %1430 = vmatpush.msra.mxu0 %v485
    %1431 = vmatpush.msra.mxu0 %v481
    %1432 = vmatpush.msra.mxu0 %v477
    %1433 = vmatpush.msra.mxu0 %v473
    %1434 = vmatpush.msra.mxu0 %v469
    %1435 = vmatpush.msra.mxu0 %v465
    %1436 = vmatpush.msra.mxu0 %v461
    %1437 = vmatpush.msra.mxu0 %v457
    %1438 = vmatpush.msra.mxu0 %v453
    %1439 = vmatpush.msra.mxu0 %v449
    %1440 = vmatpush.msra.mxu0 %v445
    %1441 = vmatpush.msra.mxu0 %v441
    %1442 = vmatpush.msra.mxu0 %v437
    %1443 = vmatpush.msra.mxu0 %v433
    %1444 = vmatmul.f32.gmra.mxu0 %v1420
    %v1445 = vpop.f32.mrf.mxu0
    %v1446 = vadd.f32 0.0, %v1445
    %1447 = vdwg.mxu0
    %1448 = vmatpush.msra.mxu0 %v494
    %1449 = vmatpush.msra.mxu0 %v490
    %1450 = vmatpush.msra.mxu0 %v486
    %1451 = vmatpush.msra.mxu0 %v482
    %1452 = vmatpush.msra.mxu0 %v478
    %1453 = vmatpush.msra.mxu0 %v474
    %1454 = vmatpush.msra.mxu0 %v470
    %1455 = vmatpush.msra.mxu0 %v466
    %1456 = vmatpush.msra.mxu0 %v462
    %1457 = vmatpush.msra.mxu0 %v458
    %1458 = vmatpush.msra.mxu0 %v454
    %1459 = vmatpush.msra.mxu0 %v450
    %1460 = vmatpush.msra.mxu0 %v446
    %1461 = vmatpush.msra.mxu0 %v442
    %1462 = vmatpush.msra.mxu0 %v438
    %1463 = vmatpush.msra.mxu0 %v434
    %1464 = vmatmul.f32.gmra.mxu0 %v1420
    %v1465 = vpop.f32.mrf.mxu0
    %v1466 = vadd.f32 0.0, %v1465
    %1467 = vdwg.mxu0
    %1468 = vmatpush.msra.mxu0 %v495
    %1469 = vmatpush.msra.mxu0 %v491
    %1470 = vmatpush.msra.mxu0 %v487
    %1471 = vmatpush.msra.mxu0 %v483
    %1472 = vmatpush.msra.mxu0 %v479
    %1473 = vmatpush.msra.mxu0 %v475
    %1474 = vmatpush.msra.mxu0 %v471
    %1475 = vmatpush.msra.mxu0 %v467
    %1476 = vmatpush.msra.mxu0 %v463
    %1477 = vmatpush.msra.mxu0 %v459
    %1478 = vmatpush.msra.mxu0 %v455
    %1479 = vmatpush.msra.mxu0 %v451
    %1480 = vmatpush.msra.mxu0 %v447
    %1481 = vmatpush.msra.mxu0 %v443
    %1482 = vmatpush.msra.mxu0 %v439
    %1483 = vmatpush.msra.mxu0 %v435
    %1484 = vmatmul.f32.gmra.mxu0 %v1420
    %v1485 = vpop.f32.mrf.mxu0
    %v1486 = vadd.f32 0.0, %v1485
    %1487 = vdwg.mxu0
    %1488 = vmatpush.msra.mxu0 %v496
    %1489 = vmatpush.msra.mxu0 %v492
    %1490 = vmatpush.msra.mxu0 %v488
    %1491 = vmatpush.msra.mxu0 %v484
    %1492 = vmatpush.msra.mxu0 %v480
    %1493 = vmatpush.msra.mxu0 %v476
    %1494 = vmatpush.msra.mxu0 %v472
    %1495 = vmatpush.msra.mxu0 %v468
    %1496 = vmatpush.msra.mxu0 %v464
    %1497 = vmatpush.msra.mxu0 %v460
    %1498 = vmatpush.msra.mxu0 %v456
    %1499 = vmatpush.msra.mxu0 %v452
    %1500 = vmatpush.msra.mxu0 %v448
    %1501 = vmatpush.msra.mxu0 %v444
    %1502 = vmatpush.msra.mxu0 %v440
    %1503 = vmatpush.msra.mxu0 %v436
    %1504 = vmatmul.f32.gmra.mxu0 %v1420
    %v1505 = vpop.f32.mrf.mxu0
    %v1506 = vadd.f32 0.0, %v1505
    %1507 = vdwg.mxu0
    %v1508 = vadd.f32 %v1424, %v1446
    %v1509 = vadd.f32 %v1425, %v1466
    %v1510 = vadd.f32 %v1426, %v1486
    %v1511 = vadd.f32 %v1427, %v1506
    %v1512 = vxor.u32 %v1508, 2147483648
    %v1513 = vxor.u32 %v1509, 2147483648
    %v1514 = vxor.u32 %v1510, 2147483648
    %v1515 = vmul.f32 %v1512, 1.442695
    %v1516 = vpow.pop %v1515
    %v1517 = vmul.f32 %v1513, 1.442695
    %v1518 = vpow.pop %v1517
    %v1519 = vmul.f32 %v1514, 1.442695
    %v1520 = vpow.pop %v1519
    %v1521 = vadd.f32 %v1516, 1.0
    %v1522 = vadd.f32 %v1518, 1.0
    %v1523 = vadd.f32 %v1520, 1.0
    %v1524 = vrcp.pop %v1521
    %v1525 = vmul.f32 %v1521, %v1524
    %v1526 = vsub.f32 1.0, %v1525
    %v1527 = vmul.f32 %v1524, %v1526
    %v1528 = vadd.f32 %v1524, %v1527
    %vm1529 = vweird.f32 %v1521
    %vm1530 = vweird.f32 %v1524
    %vm1531 = vmor %vm1529, %vm1530
    %v1532 = vsel %vm1531, %v1524, %v1528
    %v1533 = vand.u32 2147483647, %v1521
    %vm1534 = vcmp.eq.f32.partialorder %v1533, 8.507059e+37
    %v1535 = vand.u32 %v1521, 2147483648
    %v1536 = vor.u32 1.1754944e-38, %v1535
    %v1537 = vsel %vm1534, %v1536, %v1532
    %v1538 = vmul.f32 1.0, %v1537
    %v1539 = vrcp.pop %v1522
    %v1540 = vmul.f32 %v1522, %v1539
    %v1541 = vsub.f32 1.0, %v1540
    %v1542 = vmul.f32 %v1539, %v1541
    %v1543 = vadd.f32 %v1539, %v1542
    %vm1544 = vweird.f32 %v1522
    %vm1545 = vweird.f32 %v1539
    %vm1546 = vmor %vm1544, %vm1545
    %v1547 = vsel %vm1546, %v1539, %v1543
    %v1548 = vand.u32 2147483647, %v1522
    %vm1549 = vcmp.eq.f32.partialorder %v1548, 8.507059e+37
    %v1550 = vand.u32 %v1522, 2147483648
    %v1551 = vor.u32 1.1754944e-38, %v1550
    %v1552 = vsel %vm1549, %v1551, %v1547
    %v1553 = vmul.f32 1.0, %v1552
    %v1554 = vrcp.pop %v1523
    %v1555 = vmul.f32 %v1523, %v1554
    %v1556 = vsub.f32 1.0, %v1555
    %v1557 = vmul.f32 %v1554, %v1556
    %v1558 = vadd.f32 %v1554, %v1557
    %vm1559 = vweird.f32 %v1523
    %vm1560 = vweird.f32 %v1554
    %vm1561 = vmor %vm1559, %vm1560
    %v1562 = vsel %vm1561, %v1554, %v1558
    %v1563 = vand.u32 2147483647, %v1523
    %vm1564 = vcmp.eq.f32.partialorder %v1563, 8.507059e+37
    %v1565 = vand.u32 %v1523, 2147483648
    %v1566 = vor.u32 1.1754944e-38, %v1565
    %v1567 = vsel %vm1564, %v1566, %v1562
    %v1568 = vmul.f32 1.0, %v1567
    %v1569 = vtanh.pop %v1511
    %v1570 = vmul.f32 %v1553, %v1418
    %v1571 = vmul.f32 %v1538, %v1569
    %v1572 = vadd.f32 %v1570, %v1571
    %v1573 = vtanh.pop %v1572
    %v1574 = vmul.f32 %v1568, %v1573
    %s1575 = smul.u32 7, 4
    %s1576 = smul.addr %s1575, 8
    %s1577 = scalar_lea.vmem [#allocation2], %s1576
    %v1578 = vld [vmem:[%s1577] sm:$0xff]
    %v1579 = vld [vmem:[%s1577 + $0x8] sm:$0xff]
    %v1580 = vld [vmem:[%s1577 + $0x10] sm:$0xff]
    %v1581 = vld [vmem:[%s1577 + $0x18] sm:$0xff]
    %1582 = vmatpush.msra.mxu0 %v493
    %1583 = vmatpush.msra.mxu0 %v489
    %1584 = vmatpush.msra.mxu0 %v485
    %1585 = vmatpush.msra.mxu0 %v481
    %1586 = vmatpush.msra.mxu0 %v477
    %1587 = vmatpush.msra.mxu0 %v473
    %1588 = vmatpush.msra.mxu0 %v469
    %1589 = vmatpush.msra.mxu0 %v465
    %1590 = vmatpush.msra.mxu0 %v461
    %1591 = vmatpush.msra.mxu0 %v457
    %1592 = vmatpush.msra.mxu0 %v453
    %1593 = vmatpush.msra.mxu0 %v449
    %1594 = vmatpush.msra.mxu0 %v445
    %1595 = vmatpush.msra.mxu0 %v441
    %1596 = vmatpush.msra.mxu0 %v437
    %1597 = vmatpush.msra.mxu0 %v433
    %1598 = vmatmul.f32.gmra.mxu0 %v1574
    %v1599 = vpop.f32.mrf.mxu0
    %v1600 = vadd.f32 0.0, %v1599
    %1601 = vdwg.mxu0
    %1602 = vmatpush.msra.mxu0 %v494
    %1603 = vmatpush.msra.mxu0 %v490
    %1604 = vmatpush.msra.mxu0 %v486
    %1605 = vmatpush.msra.mxu0 %v482
    %1606 = vmatpush.msra.mxu0 %v478
    %1607 = vmatpush.msra.mxu0 %v474
    %1608 = vmatpush.msra.mxu0 %v470
    %1609 = vmatpush.msra.mxu0 %v466
    %1610 = vmatpush.msra.mxu0 %v462
    %1611 = vmatpush.msra.mxu0 %v458
    %1612 = vmatpush.msra.mxu0 %v454
    %1613 = vmatpush.msra.mxu0 %v450
    %1614 = vmatpush.msra.mxu0 %v446
    %1615 = vmatpush.msra.mxu0 %v442
    %1616 = vmatpush.msra.mxu0 %v438
    %1617 = vmatpush.msra.mxu0 %v434
    %1618 = vmatmul.f32.gmra.mxu0 %v1574
    %v1619 = vpop.f32.mrf.mxu0
    %v1620 = vadd.f32 0.0, %v1619
    %1621 = vdwg.mxu0
    %1622 = vmatpush.msra.mxu0 %v495
    %1623 = vmatpush.msra.mxu0 %v491
    %1624 = vmatpush.msra.mxu0 %v487
    %1625 = vmatpush.msra.mxu0 %v483
    %1626 = vmatpush.msra.mxu0 %v479
    %1627 = vmatpush.msra.mxu0 %v475
    %1628 = vmatpush.msra.mxu0 %v471
    %1629 = vmatpush.msra.mxu0 %v467
    %1630 = vmatpush.msra.mxu0 %v463
    %1631 = vmatpush.msra.mxu0 %v459
    %1632 = vmatpush.msra.mxu0 %v455
    %1633 = vmatpush.msra.mxu0 %v451
    %1634 = vmatpush.msra.mxu0 %v447
    %1635 = vmatpush.msra.mxu0 %v443
    %1636 = vmatpush.msra.mxu0 %v439
    %1637 = vmatpush.msra.mxu0 %v435
    %1638 = vmatmul.f32.gmra.mxu0 %v1574
    %v1639 = vpop.f32.mrf.mxu0
    %v1640 = vadd.f32 0.0, %v1639
    %1641 = vdwg.mxu0
    %1642 = vmatpush.msra.mxu0 %v496
    %1643 = vmatpush.msra.mxu0 %v492
    %1644 = vmatpush.msra.mxu0 %v488
    %1645 = vmatpush.msra.mxu0 %v484
    %1646 = vmatpush.msra.mxu0 %v480
    %1647 = vmatpush.msra.mxu0 %v476
    %1648 = vmatpush.msra.mxu0 %v472
    %1649 = vmatpush.msra.mxu0 %v468
    %1650 = vmatpush.msra.mxu0 %v464
    %1651 = vmatpush.msra.mxu0 %v460
    %1652 = vmatpush.msra.mxu0 %v456
    %1653 = vmatpush.msra.mxu0 %v452
    %1654 = vmatpush.msra.mxu0 %v448
    %1655 = vmatpush.msra.mxu0 %v444
    %1656 = vmatpush.msra.mxu0 %v440
    %1657 = vmatpush.msra.mxu0 %v436
    %1658 = vmatmul.f32.gmra.mxu0 %v1574
    %v1659 = vpop.f32.mrf.mxu0
    %v1660 = vadd.f32 0.0, %v1659
    %1661 = vdwg.mxu0
    %v1662 = vadd.f32 %v1578, %v1600
    %v1663 = vadd.f32 %v1579, %v1620
    %v1664 = vadd.f32 %v1580, %v1640
    %v1665 = vadd.f32 %v1581, %v1660
    %v1666 = vxor.u32 %v1662, 2147483648
    %v1667 = vxor.u32 %v1663, 2147483648
    %v1668 = vxor.u32 %v1664, 2147483648
    %v1669 = vmul.f32 %v1666, 1.442695
    %v1670 = vpow.pop %v1669
    %v1671 = vmul.f32 %v1667, 1.442695
    %v1672 = vpow.pop %v1671
    %v1673 = vmul.f32 %v1668, 1.442695
    %v1674 = vpow.pop %v1673
    %v1675 = vadd.f32 %v1670, 1.0
    %v1676 = vadd.f32 %v1672, 1.0
    %v1677 = vadd.f32 %v1674, 1.0
    %v1678 = vrcp.pop %v1675
    %v1679 = vmul.f32 %v1675, %v1678
    %v1680 = vsub.f32 1.0, %v1679
    %v1681 = vmul.f32 %v1678, %v1680
    %v1682 = vadd.f32 %v1678, %v1681
    %vm1683 = vweird.f32 %v1675
    %vm1684 = vweird.f32 %v1678
    %vm1685 = vmor %vm1683, %vm1684
    %v1686 = vsel %vm1685, %v1678, %v1682
    %v1687 = vand.u32 2147483647, %v1675
    %vm1688 = vcmp.eq.f32.partialorder %v1687, 8.507059e+37
    %v1689 = vand.u32 %v1675, 2147483648
    %v1690 = vor.u32 1.1754944e-38, %v1689
    %v1691 = vsel %vm1688, %v1690, %v1686
    %v1692 = vmul.f32 1.0, %v1691
    %v1693 = vrcp.pop %v1676
    %v1694 = vmul.f32 %v1676, %v1693
    %v1695 = vsub.f32 1.0, %v1694
    %v1696 = vmul.f32 %v1693, %v1695
    %v1697 = vadd.f32 %v1693, %v1696
    %vm1698 = vweird.f32 %v1676
    %vm1699 = vweird.f32 %v1693
    %vm1700 = vmor %vm1698, %vm1699
    %v1701 = vsel %vm1700, %v1693, %v1697
    %v1702 = vand.u32 2147483647, %v1676
    %vm1703 = vcmp.eq.f32.partialorder %v1702, 8.507059e+37
    %v1704 = vand.u32 %v1676, 2147483648
    %v1705 = vor.u32 1.1754944e-38, %v1704
    %v1706 = vsel %vm1703, %v1705, %v1701
    %v1707 = vmul.f32 1.0, %v1706
    %v1708 = vrcp.pop %v1677
    %v1709 = vmul.f32 %v1677, %v1708
    %v1710 = vsub.f32 1.0, %v1709
    %v1711 = vmul.f32 %v1708, %v1710
    %v1712 = vadd.f32 %v1708, %v1711
    %vm1713 = vweird.f32 %v1677
    %vm1714 = vweird.f32 %v1708
    %vm1715 = vmor %vm1713, %vm1714
    %v1716 = vsel %vm1715, %v1708, %v1712
    %v1717 = vand.u32 2147483647, %v1677
    %vm1718 = vcmp.eq.f32.partialorder %v1717, 8.507059e+37
    %v1719 = vand.u32 %v1677, 2147483648
    %v1720 = vor.u32 1.1754944e-38, %v1719
    %v1721 = vsel %vm1718, %v1720, %v1716
    %v1722 = vmul.f32 1.0, %v1721
    %v1723 = vtanh.pop %v1665
    %v1724 = vmul.f32 %v1707, %v1572
    %v1725 = vmul.f32 %v1692, %v1723
    %v1726 = vadd.f32 %v1724, %v1725
    %v1727 = vtanh.pop %v1726
    %v1728 = vmul.f32 %v1722, %v1727
    %v1729 = vld [vmem:[#allocation5] sm:$0xff]
    %v1730 = vld [vmem:[#allocation5 + $0x8] sm:$0xff]
    %v1731 = vld [vmem:[#allocation5 + $0x10] sm:$0xff]
    %v1732 = vld [vmem:[#allocation5 + $0x18] sm:$0xff]
    %v1733 = vld [vmem:[#allocation5 + $0x20] sm:$0xff]
    %v1734 = vld [vmem:[#allocation5 + $0x28] sm:$0xff]
    %v1735 = vld [vmem:[#allocation5 + $0x30] sm:$0xff]
    %v1736 = vld [vmem:[#allocation5 + $0x38] sm:$0xff]
    %v1737 = vld [vmem:[#allocation5 + $0x40] sm:$0xff]
    %v1738 = vld [vmem:[#allocation5 + $0x48] sm:$0xff]
    %v1739 = vld [vmem:[#allocation5 + $0x50] sm:$0xff]
    %v1740 = vld [vmem:[#allocation5 + $0x58] sm:$0xff]
    %v1741 = vld [vmem:[#allocation5 + $0x60] sm:$0xff]
    %v1742 = vld [vmem:[#allocation5 + $0x68] sm:$0xff]
    %v1743 = vld [vmem:[#allocation5 + $0x70] sm:$0xff]
    %v1744 = vld [vmem:[#allocation5 + $0x78] sm:$0xff]
    %v1745 = vld [vmem:[%s5] sm:$0x1]
    %v1747 = vperm.slane %v1745, 0
    %1749 = vmatpush.msra.mxu0 %v1744
    %1750 = vmatpush.msra.mxu0 %v1743
    %1751 = vmatpush.msra.mxu0 %v1742
    %1752 = vmatpush.msra.mxu0 %v1741
    %1753 = vmatpush.msra.mxu0 %v1740
    %1754 = vmatpush.msra.mxu0 %v1739
    %1755 = vmatpush.msra.mxu0 %v1738
    %1756 = vmatpush.msra.mxu0 %v1737
    %1757 = vmatpush.msra.mxu0 %v1736
    %1758 = vmatpush.msra.mxu0 %v1735
    %1759 = vmatpush.msra.mxu0 %v1734
    %1760 = vmatpush.msra.mxu0 %v1733
    %1761 = vmatpush.msra.mxu0 %v1732
    %1762 = vmatpush.msra.mxu0 %v1731
    %1763 = vmatpush.msra.mxu0 %v1730
    %1764 = vmatpush.msra.mxu0 %v1729
    %1765 = vmatmul.f32.gmra.mxu0 %v1728
    %v1766 = vpop.f32.mrf.mxu0
    %v1767 = vadd.f32 %v1747, %v1766
    %1768 = vdwg.mxu0
    %1769 = vst [vmem:[%s6] sm:$0xff] %v1767
    // Predicated region
    $region34: #{lstm_classifier.1} parent=1 // pred_check
      _
    $region35: #{lstm_classifier.1} parent=1 // pred_check_branch
      %1771 = sbr.rel (0) target = $region37
    $region36: #{lstm_classifier.1} parent=1 // pred_region
      _
    $region37: #{lstm_classifier.1} parent=1 // pred_fallthru
      _
    // Predicated region
    $region38: #{lstm_classifier.1} parent=1 // pred_check
      _
    $region39: #{lstm_classifier.1} parent=1 // pred_check_branch
      %1773 = sbr.rel (0) target = $region41
    $region40: #{lstm_classifier.1} parent=1 // pred_region
      _
    $region41: #{lstm_classifier.1} parent=1 // pred_fallthru
      _
    %1774 = vsyncpa [#allocation4], 1
    %1775 = vsyncpa [#allocation6], 1

</llo_original>
